<compile_context>
chip_gen: v5e
topology: v5e:2x2
jax: 0.10.0
libtpu: 0.0.40
codegen_flags: <defaults>
</compile_context>

<pallas_src>
import math
from functools import partial

import numpy as np

import jax
import jax.numpy as jnp
from jax.experimental import pallas as pl
from jax.experimental.pallas import tpu as pltpu


# ----------------------------- helpers -------------------------------------

def _gaussian_1d(k_size=5, sigma=1.0):
    """1-D factor of Communication.init_gaussian_filter's 2-D kernel.

    gk[di, dj] == g1d[di] * g1d[dj], so the 5x5 conv2d is applied as two
    separable 5-tap passes.
    """
    center = k_size // 2
    t = np.arange(k_size, dtype=np.float64) - center
    g = np.sqrt(1.0 / (2.0 * np.pi * sigma)) * np.exp(
        -np.square(t) / (2.0 * np.square(sigma)))
    return [float(v) for v in g]


def _vmem_budget():
    """(scoped vmem_limit_bytes, byte budget for pipelined blocks)."""
    cap = 64 << 20                       # v7x-safe fallback
    try:
        cap = int(pltpu.get_tpu_info().vmem_capacity_bytes)
    except Exception:
        pass
    scoped = min(cap // 2, 64 << 20)     # 32 MiB on v7x, 64 MiB on v5e/v6e
    return scoped, int(scoped * 0.6)


def _choose_lane_tile(HW, C, B, block_budget_bytes):
    """Pick the pixel (lane) tile TP and the padded pixel count HWp.

    Per-lane f32 bytes across all live buffers: x in (2 bufs)*C + mask 2,
    out 2*C, scratch (x0 + acc + m + l) ~ 2*C + 2  ->  ~(6C + 4) * 4.
    """
    per_lane = 4 * (6 * C + 8)
    cap = max(128, (block_budget_bytes // per_lane) // 128 * 128)
    if HW <= cap:
        TP = HW                              # single tile, no lane padding
    else:
        best = 0
        t = 128
        while t <= cap:                      # 128-multiple divisor (no pad)
            if HW % t == 0:
                best = t
            t += 128
        TP = best if best * 4 >= cap else cap
    # v7x has 2 TensorCores; keep at least 2 steps on the parallel grid axes.
    if B == 1 and TP >= 256 and HW >= 256:
        TP = ((TP // 2) + 127) // 128 * 128
    HWp = ((HW + TP - 1) // TP) * TP
    return int(TP), int(HWp)


# ----------------------------- Pallas kernels ------------------------------

def _make_mask_kernel(N, A, H, W, k_size, g1d, threshold, offsets, lens, B):
    """Fused Communication kernel for all N cavs in ONE grid step:
    sigmoid -> max over anchors -> separable gaussian smoothing -> threshold,
    plus the per-group (pre-ego-override) communication rate."""

    def kernel(psm_ref, mask_ref, rate_ref):
        # psm_ref: (N, A, H+2p, W+2p); the halo holds -1e9 so sigmoid()==0,
        # reproducing the reference's zero-padded confidence map.
        conf = jax.nn.sigmoid(psm_ref[:, 0])                 # (N, Hp, Wp)
        for a in range(1, A):
            conf = jnp.maximum(conf, jax.nn.sigmoid(psm_ref[:, a]))

        # Separable gaussian smoothing: horizontal then vertical 5-tap pass.
        acc_h = g1d[0] * conf[:, :, 0:W]
        for dj in range(1, k_size):
            acc_h = acc_h + g1d[dj] * conf[:, :, dj:dj + W]  # (N, Hp, W)
        acc = g1d[0] * acc_h[:, 0:H, :]
        for di in range(1, k_size):
            acc = acc + g1d[di] * acc_h[:, di:di + H, :]     # (N, H, W)

        m = jnp.where(acc > threshold, 1.0, 0.0).astype(jnp.float32)
        mask_ref[...] = m

        r = jnp.float32(0.0)
        for b in range(B):
            off, L = offsets[b], lens[b]
            r = r + jnp.sum(m[off:off + L]) / jnp.float32(L * H * W)
        rate_ref[...] = jnp.ones((1, 1), jnp.float32) * (r / jnp.float32(B))

    return kernel


def _make_group_attention_kernel(C, TP, Lmax, scale):
    """AttentionFusion, streaming one cav row per grid step (online softmax).

    Only the ego row (row 0) of the per-pixel attention is needed, so only
    score[0, j] is computed.  The ego slab (pre-scaled by 1/sqrt(C)) is cached
    in VMEM scratch at j == 0; rows j >= L_b are skipped entirely (their DMA
    is also skipped because the clamped index_map repeats the block index).
    """

    def kernel(offs_ref, lens_ref, x_ref, m_ref, o_ref,
               x0_scr, mx_scr, l_scr, acc_scr):
        b = pl.program_id(0)
        j = pl.program_id(2)
        L_b = lens_ref[b]

        @pl.when(j == 0)
        def _init():
            x0_scr[...] = x_ref[0] * scale            # ego row, pre-scaled
            mx_scr[...] = jnp.full((1, TP), -1e30, jnp.float32)
            l_scr[...] = jnp.zeros((1, TP), jnp.float32)
            acc_scr[...] = jnp.zeros((C, TP), jnp.float32)

        @pl.when(j < L_b)
        def _step():
            xm = x_ref[0] * m_ref[0]                  # mask row is 1 for ego
            s = jnp.sum(x0_scr[...] * xm, axis=0, keepdims=True)   # (1, TP)
            m_old = mx_scr[...]
            m_new = jnp.maximum(m_old, s)
            alpha = jnp.exp(m_old - m_new)            # EUP
            e = jnp.exp(s - m_new)
            l_scr[...] = alpha * l_scr[...] + e
            acc_scr[...] = alpha * acc_scr[...] + e * xm
            mx_scr[...] = m_new

        @pl.when(j == Lmax - 1)
        def _finalize():
            o_ref[0] = (acc_scr[...] *
                        pl.reciprocal(l_scr[...], approx=False)
                        ).astype(o_ref.dtype)

    return kernel


# ----------------------------- wrappers -------------------------------------

def _communication(psm_single, lens, offsets, threshold, k_size, sigma):
    """Communication.forward (eval + threshold + gaussian smoothing) as one
    single-step pallas_call.  Returns the (pre-ego-override) mask and rate."""
    N, A, H, W = psm_single.shape
    B = len(lens)
    pad = (k_size - 1) // 2
    g1d = _gaussian_1d(k_size, sigma)

    # Pad psm with a very negative value so the in-kernel sigmoid of the halo
    # is exactly 0 (== the reference's zero-padded confidence map).
    psm_pad = jnp.pad(psm_single.astype(jnp.float32),
                      ((0, 0), (0, 0), (pad, pad), (pad, pad)),
                      constant_values=-1e9)

    mask, rate = pl.pallas_call(
        _make_mask_kernel(N, A, H, W, k_size, g1d, float(threshold),
                          offsets, lens, B),
        out_shape=(jax.ShapeDtypeStruct((N, H, W), jnp.float32),
                   jax.ShapeDtypeStruct((1, 1), jnp.float32)),
    )(psm_pad)
    return mask, rate[0, 0]


@partial(jax.jit,
         static_argnames=("record_len", "threshold", "k_size", "sigma", "fully"))
def hete_where2comm_fuse_forward(features_2d, psm_single, pairwise_t_matrix, *,
                                 record_len, threshold=0.45, k_size=5,
                                 sigma=1.0, fully=False):
    del pairwise_t_matrix  # identity transforms assumed (matches reference)
    N, C, H, W = features_2d.shape
    lens = tuple(int(l) for l in record_len)
    B = len(lens)
    offsets = [0]
    for l in lens[:-1]:
        offsets.append(offsets[-1] + l)
    offsets = tuple(offsets)
    Lmax = max(lens)
    HW = H * W
    scale = 1.0 / math.sqrt(C)

    vmem_limit, block_budget = _vmem_budget()
    TP, HWp = _choose_lane_tile(HW, C, B, block_budget)

    # Features stay in their natural (N, C, HW) layout: no group staging
    # buffer and no wrapper-side mask multiply.  Lane padding only if needed.
    x_flat = features_2d.astype(jnp.float32).reshape(N, C, HW)
    if HWp != HW:
        x_flat = jnp.pad(x_flat, ((0, 0), (0, 0), (0, HWp - HW)))

    if fully:
        rate = jnp.float32(1.0)
        mask_g = jnp.ones((N, 1, HWp), jnp.float32)
    else:
        mask_hw, rate = _communication(psm_single, lens, offsets,
                                       threshold, k_size, sigma)
        mask_g = mask_hw.reshape(N, 1, HW)
        if HWp != HW:
            mask_g = jnp.pad(mask_g, ((0, 0), (0, 0), (0, HWp - HW)))
        # Reference sets the ego mask row to 1 before x * mask.
        mask_g = mask_g.at[np.asarray(offsets), :, :].set(1.0)

    offs_arr = jnp.asarray(offsets, dtype=jnp.int32)
    lens_arr = jnp.asarray(lens, dtype=jnp.int32)

    def _row(b, j, offs_ref, lens_ref):
        # Clamp padded j steps to the group's last valid row so the block
        # index repeats (DMA skipped) and stays in bounds.
        return offs_ref[b] + jnp.minimum(j, lens_ref[b] - 1)

    out = pl.pallas_call(
        _make_group_attention_kernel(C, TP, Lmax, scale),
        out_shape=jax.ShapeDtypeStruct((B, C, HWp), jnp.float32),
        grid_spec=pltpu.PrefetchScalarGridSpec(
            num_scalar_prefetch=2,
            grid=(B, HWp // TP, Lmax),
            in_specs=[
                pl.BlockSpec((1, C, TP),
                             lambda b, t, j, offs, lens:
                             (_row(b, j, offs, lens), 0, t)),
                pl.BlockSpec((1, 1, TP),
                             lambda b, t, j, offs, lens:
                             (_row(b, j, offs, lens), 0, t)),
            ],
            out_specs=pl.BlockSpec((1, C, TP),
                                   lambda b, t, j, offs, lens: (b, 0, t)),
            scratch_shapes=[
                pltpu.VMEM((C, TP), jnp.float32),   # ego row * 1/sqrt(C)
                pltpu.VMEM((1, TP), jnp.float32),   # running max
                pltpu.VMEM((1, TP), jnp.float32),   # running denom
                pltpu.VMEM((C, TP), jnp.float32),   # running numerator
            ]),
        compiler_params=pltpu.CompilerParams(
            dimension_semantics=("parallel", "parallel", "arbitrary"),
            vmem_limit_bytes=vmem_limit),
    )(offs_arr, lens_arr, x_flat, mask_g)

    x_fuse = out[:, :, :HW].reshape(B, C, H, W)
    return x_fuse, rate


# ----------------------------- pure-JAX reference ---------------------------

def reference_forward(features_2d, psm_single, record_len, pairwise_t_matrix, *,
                      threshold, k_size, sigma):
    N, C, H, W = features_2d.shape
    lens = tuple(int(l) for l in record_len)
    B = len(lens)
    offsets = np.concatenate([[0], np.cumsum(lens)[:-1]]).astype(int)
    pad = (k_size - 1) // 2
    g1d = _gaussian_1d(k_size, sigma)

    conf = jnp.max(jax.nn.sigmoid(psm_single.astype(jnp.float32)), axis=1)
    conf_pad = jnp.pad(conf, ((0, 0), (pad, pad), (pad, pad)))
    acc_h = g1d[0] * conf_pad[:, :, 0:W]
    for dj in range(1, k_size):
        acc_h = acc_h + g1d[dj] * conf_pad[:, :, dj:dj + W]
    smooth = g1d[0] * acc_h[:, 0:H, :]
    for di in range(1, k_size):
        smooth = smooth + g1d[di] * acc_h[:, di:di + H, :]
    mask = (smooth > threshold).astype(jnp.float32)

    rates = []
    for b in range(B):
        off, L = int(offsets[b]), lens[b]
        rates.append(jnp.sum(mask[off:off + L]) / (L * H * W))
        mask = mask.at[off].set(1.0)
    rate = sum(rates) / B

    x = features_2d.astype(jnp.float32) * mask[:, None, :, :]
    outs = []
    for b in range(B):
        off, L = int(offsets[b]), lens[b]
        xg = x[off:off + L].reshape(L, C, H * W).transpose(2, 0, 1)  # (HW,L,C)
        score = jnp.einsum('pic,pjc->pij', xg, xg,
                           precision=jax.lax.Precision.HIGHEST) / math.sqrt(C)
        attn = jax.nn.softmax(score, axis=-1)
        ctx = jnp.einsum('pij,pjc->pic', attn, xg,
                         precision=jax.lax.Precision.HIGHEST)
        outs.append(ctx.transpose(1, 2, 0).reshape(L, C, H, W)[0])
    return jnp.stack(outs), rate


# ----------------------------- main -----------------------------------------

if __name__ == "__main__":
    key = jax.random.PRNGKey(0)
    record_len = (2, 3)                      # B = 2 groups, N = 5 cavs
    B = len(record_len)
    N = int(sum(record_len))
    C, H, W, A = 32, 16, 16, 2
    threshold, k_size, sigma = 0.45, 5, 1.0

    k1, k2 = jax.random.split(key)
    features_2d = jax.random.normal(k1, (N, C, H, W), dtype=jnp.float32)
    psm_single = jax.random.normal(k2, (N, A, H, W), dtype=jnp.float32)
    pairwise_t_matrix = jnp.tile(jnp.eye(4, dtype=jnp.float32),
                                 (B, 5, 5, 1, 1))

    x_fuse, rate = hete_where2comm_fuse_forward(
        features_2d, psm_single, pairwise_t_matrix,
        record_len=record_len, threshold=threshold, k_size=k_size, sigma=sigma)
    x_fuse = jax.block_until_ready(x_fuse)
    rate = jax.block_until_ready(rate)

    ref_fuse, ref_rate = reference_forward(
        features_2d, psm_single, record_len, pairwise_t_matrix,
        threshold=threshold, k_size=k_size, sigma=sigma)
    ref_fuse = jax.block_until_ready(ref_fuse)

    np.testing.assert_allclose(np.asarray(x_fuse), np.asarray(ref_fuse),
                               rtol=1e-3, atol=1e-4)
    np.testing.assert_allclose(float(rate), float(ref_rate),
                               rtol=1e-5, atol=1e-6)
    print("KERNEL_OK")
</pallas_src>

<mosaic_0001>
module attributes {stable_mosaic.version = 11 : i64} {
  func.func @kernel(%arg0: memref<5x2x20x20xf32, #tpu.memory_space<vmem>>, %arg1: memref<5x16x16xf32, #tpu.memory_space<vmem>>, %arg2: memref<1x1xf32, #tpu.memory_space<vmem>>) attributes {dimension_semantics = [], scalar_prefetch = 0 : i64, scratch_operands = 0 : i64, tpu.core_type = #tpu.core_type<tc>} {
    %c0 = arith.constant 0 : index
    %c0_0 = arith.constant 0 : index
    %c0_1 = arith.constant 0 : index
    %c0_2 = arith.constant 0 : index
    %0 = vector.load %arg0[%c0, %c0_0, %c0_1, %c0_2] : memref<5x2x20x20xf32, #tpu.memory_space<vmem>>, vector<5x1x20x20xf32>
    %1 = vector.shape_cast %0 : vector<5x1x20x20xf32> to vector<5x20x20xf32>
    %2 = arith.negf %1 : vector<5x20x20xf32>
    %3 = math.exp %2 : vector<5x20x20xf32>
    %cst = arith.constant 1.000000e+00 : f32
    %4 = vector.broadcast %cst : f32 to vector<5x20x20xf32>
    %5 = arith.addf %4, %3 : vector<5x20x20xf32>
    %6 = arith.divf %4, %5 : vector<5x20x20xf32>
    %c0_3 = arith.constant 0 : index
    %c1 = arith.constant 1 : index
    %c0_4 = arith.constant 0 : index
    %c0_5 = arith.constant 0 : index
    %7 = vector.load %arg0[%c0_3, %c1, %c0_4, %c0_5] : memref<5x2x20x20xf32, #tpu.memory_space<vmem>>, vector<5x1x20x20xf32>
    %8 = vector.shape_cast %7 : vector<5x1x20x20xf32> to vector<5x20x20xf32>
    %9 = arith.negf %8 : vector<5x20x20xf32>
    %10 = math.exp %9 : vector<5x20x20xf32>
    %cst_6 = arith.constant 1.000000e+00 : f32
    %11 = vector.broadcast %cst_6 : f32 to vector<5x20x20xf32>
    %12 = arith.addf %11, %10 : vector<5x20x20xf32>
    %13 = arith.divf %11, %12 : vector<5x20x20xf32>
    %14 = arith.maximumf %6, %13 : vector<5x20x20xf32>
    %15 = vector.extract_strided_slice %14 {offsets = [0, 0, 0], sizes = [5, 20, 16], strides = [1, 1, 1]} : vector<5x20x20xf32> to vector<5x20x16xf32>
    %cst_7 = arith.constant 0.0539909676 : f32
    %16 = vector.broadcast %cst_7 : f32 to vector<5x20x16xf32>
    %17 = arith.mulf %16, %15 : vector<5x20x16xf32>
    %18 = vector.extract_strided_slice %14 {offsets = [0, 0, 1], sizes = [5, 20, 16], strides = [1, 1, 1]} : vector<5x20x20xf32> to vector<5x20x16xf32>
    %cst_8 = arith.constant 0.241970718 : f32
    %19 = vector.broadcast %cst_8 : f32 to vector<5x20x16xf32>
    %20 = arith.mulf %19, %18 : vector<5x20x16xf32>
    %21 = arith.addf %17, %20 : vector<5x20x16xf32>
    %22 = vector.extract_strided_slice %14 {offsets = [0, 0, 2], sizes = [5, 20, 16], strides = [1, 1, 1]} : vector<5x20x20xf32> to vector<5x20x16xf32>
    %cst_9 = arith.constant 0.398942292 : f32
    %23 = vector.broadcast %cst_9 : f32 to vector<5x20x16xf32>
    %24 = arith.mulf %23, %22 : vector<5x20x16xf32>
    %25 = arith.addf %21, %24 : vector<5x20x16xf32>
    %26 = vector.extract_strided_slice %14 {offsets = [0, 0, 3], sizes = [5, 20, 16], strides = [1, 1, 1]} : vector<5x20x20xf32> to vector<5x20x16xf32>
    %cst_10 = arith.constant 0.241970718 : f32
    %27 = vector.broadcast %cst_10 : f32 to vector<5x20x16xf32>
    %28 = arith.mulf %27, %26 : vector<5x20x16xf32>
    %29 = arith.addf %25, %28 : vector<5x20x16xf32>
    %30 = vector.extract_strided_slice %14 {offsets = [0, 0, 4], sizes = [5, 20, 16], strides = [1, 1, 1]} : vector<5x20x20xf32> to vector<5x20x16xf32>
    %cst_11 = arith.constant 0.0539909676 : f32
    %31 = vector.broadcast %cst_11 : f32 to vector<5x20x16xf32>
    %32 = arith.mulf %31, %30 : vector<5x20x16xf32>
    %33 = arith.addf %29, %32 : vector<5x20x16xf32>
    %34 = vector.extract_strided_slice %33 {offsets = [0, 0, 0], sizes = [5, 16, 16], strides = [1, 1, 1]} : vector<5x20x16xf32> to vector<5x16x16xf32>
    %cst_12 = arith.constant 0.0539909676 : f32
    %35 = vector.broadcast %cst_12 : f32 to vector<5x16x16xf32>
    %36 = arith.mulf %35, %34 : vector<5x16x16xf32>
    %37 = vector.extract_strided_slice %33 {offsets = [0, 1, 0], sizes = [5, 16, 16], strides = [1, 1, 1]} : vector<5x20x16xf32> to vector<5x16x16xf32>
    %cst_13 = arith.constant 0.241970718 : f32
    %38 = vector.broadcast %cst_13 : f32 to vector<5x16x16xf32>
    %39 = arith.mulf %38, %37 : vector<5x16x16xf32>
    %40 = arith.addf %36, %39 : vector<5x16x16xf32>
    %41 = vector.extract_strided_slice %33 {offsets = [0, 2, 0], sizes = [5, 16, 16], strides = [1, 1, 1]} : vector<5x20x16xf32> to vector<5x16x16xf32>
    %cst_14 = arith.constant 0.398942292 : f32
    %42 = vector.broadcast %cst_14 : f32 to vector<5x16x16xf32>
    %43 = arith.mulf %42, %41 : vector<5x16x16xf32>
    %44 = arith.addf %40, %43 : vector<5x16x16xf32>
    %45 = vector.extract_strided_slice %33 {offsets = [0, 3, 0], sizes = [5, 16, 16], strides = [1, 1, 1]} : vector<5x20x16xf32> to vector<5x16x16xf32>
    %cst_15 = arith.constant 0.241970718 : f32
    %46 = vector.broadcast %cst_15 : f32 to vector<5x16x16xf32>
    %47 = arith.mulf %46, %45 : vector<5x16x16xf32>
    %48 = arith.addf %44, %47 : vector<5x16x16xf32>
    %49 = vector.extract_strided_slice %33 {offsets = [0, 4, 0], sizes = [5, 16, 16], strides = [1, 1, 1]} : vector<5x20x16xf32> to vector<5x16x16xf32>
    %cst_16 = arith.constant 0.0539909676 : f32
    %50 = vector.broadcast %cst_16 : f32 to vector<5x16x16xf32>
    %51 = arith.mulf %50, %49 : vector<5x16x16xf32>
    %52 = arith.addf %48, %51 : vector<5x16x16xf32>
    %cst_17 = arith.constant 4.500000e-01 : f32
    %53 = vector.broadcast %cst_17 : f32 to vector<5x16x16xf32>
    %54 = arith.cmpf ogt, %52, %53 : vector<5x16x16xf32>
    %cst_18 = arith.constant 1.000000e+00 : f32
    %cst_19 = arith.constant 0.000000e+00 : f32
    %55 = vector.broadcast %cst_18 : f32 to vector<5x16x16xf32>
    %56 = vector.broadcast %cst_19 : f32 to vector<5x16x16xf32>
    %57 = arith.select %54, %55, %56 : vector<5x16x16xi1>, vector<5x16x16xf32>
    %c0_20 = arith.constant 0 : index
    %c0_21 = arith.constant 0 : index
    %c0_22 = arith.constant 0 : index
    %58 = vector.load %arg1[%c0_20, %c0_21, %c0_22] : memref<5x16x16xf32, #tpu.memory_space<vmem>>, vector<5x16x16xf32>
    tpu.vector_store %arg1[%c0_20, %c0_21, %c0_22], %57 {strides = array<i32>} : memref<5x16x16xf32, #tpu.memory_space<vmem>>, vector<5x16x16xf32>,
    %59 = vector.extract_strided_slice %57 {offsets = [0, 0, 0], sizes = [2, 16, 16], strides = [1, 1, 1]} : vector<5x16x16xf32> to vector<2x16x16xf32>
    %60 = vector.shape_cast %59 : vector<2x16x16xf32> to vector<1x2x16x16xf32>
    %cst_23 = arith.constant dense<0.000000e+00> : vector<1xf32>
    %61 = vector.multi_reduction <add>, %60, %cst_23 [1, 2, 3] : vector<1x2x16x16xf32> to vector<1xf32>
    %62 = vector.shape_cast %61 : vector<1xf32> to vector<1x1x1x1xf32>
    %63 = vector.extract %62[0, 0, 0, 0] : f32 from vector<1x1x1x1xf32>
    %cst_24 = arith.constant 5.120000e+02 : f32
    %64 = arith.divf %63, %cst_24 : f32
    %cst_25 = arith.constant 0.000000e+00 : f32
    %65 = arith.addf %cst_25, %64 : f32
    %66 = vector.extract_strided_slice %57 {offsets = [2, 0, 0], sizes = [3, 16, 16], strides = [1, 1, 1]} : vector<5x16x16xf32> to vector<3x16x16xf32>
    %67 = vector.shape_cast %66 : vector<3x16x16xf32> to vector<1x3x16x16xf32>
    %cst_26 = arith.constant dense<0.000000e+00> : vector<1xf32>
    %68 = vector.multi_reduction <add>, %67, %cst_26 [1, 2, 3] : vector<1x3x16x16xf32> to vector<1xf32>
    %69 = vector.shape_cast %68 : vector<1xf32> to vector<1x1x1x1xf32>
    %70 = vector.extract %69[0, 0, 0, 0] : f32 from vector<1x1x1x1xf32>
    %cst_27 = arith.constant 7.680000e+02 : f32
    %71 = arith.divf %70, %cst_27 : f32
    %72 = arith.addf %65, %71 : f32
    %cst_28 = arith.constant 1.000000e+00 : f32
    %73 = vector.broadcast %cst_28 : f32 to vector<1x1xf32>
    %cst_29 = arith.constant 2.000000e+00 : f32
    %74 = arith.divf %72, %cst_29 : f32
    %75 = vector.broadcast %74 : f32 to vector<1x1xf32>
    %76 = arith.mulf %73, %75 : vector<1x1xf32>
    %c0_30 = arith.constant 0 : index
    %c0_31 = arith.constant 0 : index
    %77 = vector.load %arg2[%c0_30, %c0_31] : memref<1x1xf32, #tpu.memory_space<vmem>>, vector<1x1xf32>
    tpu.vector_store %arg2[%c0_30, %c0_31], %76 {strides = array<i32>} : memref<1x1xf32, #tpu.memory_space<vmem>>, vector<1x1xf32>,
    return
  }
}

module attributes {stable_mosaic.version = 11 : i64} {
  func.func @kernel(%arg0: i32, %arg1: i32, %arg2: i32, %arg3: memref<2xi32, #tpu.memory_space<smem>>, %arg4: memref<2xi32, #tpu.memory_space<smem>>, %arg5: memref<1x32x256xf32, #tpu.memory_space<vmem>>, %arg6: memref<1x1x256xf32, #tpu.memory_space<vmem>>, %arg7: memref<1x32x256xf32, #tpu.memory_space<vmem>>, %arg8: memref<32x256xf32, #tpu.memory_space<vmem>>, %arg9: memref<1x256xf32, #tpu.memory_space<vmem>>, %arg10: memref<1x256xf32, #tpu.memory_space<vmem>>, %arg11: memref<32x256xf32, #tpu.memory_space<vmem>>) attributes {dimension_semantics = [#tpu.dimension_semantics<parallel>, #tpu.dimension_semantics<parallel>, #tpu.dimension_semantics<arbitrary>], iteration_bounds = array<i64: 2, 1, 3>, scalar_prefetch = 2 : i64, scratch_operands = 4 : i64, tpu.core_type = #tpu.core_type<tc>, window_params = [{transform_indices = @transform_0, window_bounds = array<i64: 1, 32, 256>}, {transform_indices = @transform_1, window_bounds = array<i64: 1, 1, 256>}, {transform_indices = @transform_2, window_bounds = array<i64: 1, 32, 256>}]} {
    %0 = arith.index_cast %arg0 : i32 to index
    %1 = memref.load %arg4[%0] : memref<2xi32, #tpu.memory_space<smem>>
    %c0_i32 = arith.constant 0 : i32
    %2 = arith.cmpi eq, %arg2, %c0_i32 : i32
    %3 = arith.extui %2 : i1 to i32
    %c0_i32_0 = arith.constant 0 : i32
    %4 = arith.cmpi ne, %3, %c0_i32_0 : i32
    scf.if %4 {
      %c0 = arith.constant 0 : index
      %c0_3 = arith.constant 0 : index
      %c0_4 = arith.constant 0 : index
      %11 = vector.load %arg5[%c0, %c0_3, %c0_4] : memref<1x32x256xf32, #tpu.memory_space<vmem>>, vector<1x32x256xf32>
      %12 = vector.shape_cast %11 : vector<1x32x256xf32> to vector<32x256xf32>
      %cst = arith.constant 0.176776692 : f32
      %13 = vector.broadcast %cst : f32 to vector<32x256xf32>
      %14 = arith.mulf %12, %13 : vector<32x256xf32>
      %c0_5 = arith.constant 0 : index
      %c0_6 = arith.constant 0 : index
      %15 = vector.load %arg8[%c0_5, %c0_6] : memref<32x256xf32, #tpu.memory_space<vmem>>, vector<32x256xf32>
      tpu.vector_store %arg8[%c0_5, %c0_6], %14 {strides = array<i32>} : memref<32x256xf32, #tpu.memory_space<vmem>>, vector<32x256xf32>,
      %cst_7 = arith.constant -1.000000e+30 : f32
      %16 = vector.broadcast %cst_7 : f32 to vector<1x256xf32>
      %c0_8 = arith.constant 0 : index
      %c0_9 = arith.constant 0 : index
      %17 = vector.load %arg9[%c0_8, %c0_9] : memref<1x256xf32, #tpu.memory_space<vmem>>, vector<1x256xf32>
      tpu.vector_store %arg9[%c0_8, %c0_9], %16 {strides = array<i32>} : memref<1x256xf32, #tpu.memory_space<vmem>>, vector<1x256xf32>,
      %cst_10 = arith.constant 0.000000e+00 : f32
      %18 = vector.broadcast %cst_10 : f32 to vector<1x256xf32>
      %c0_11 = arith.constant 0 : index
      %c0_12 = arith.constant 0 : index
      %19 = vector.load %arg10[%c0_11, %c0_12] : memref<1x256xf32, #tpu.memory_space<vmem>>, vector<1x256xf32>
      tpu.vector_store %arg10[%c0_11, %c0_12], %18 {strides = array<i32>} : memref<1x256xf32, #tpu.memory_space<vmem>>, vector<1x256xf32>,
      %cst_13 = arith.constant 0.000000e+00 : f32
      %20 = vector.broadcast %cst_13 : f32 to vector<32x256xf32>
      %c0_14 = arith.constant 0 : index
      %c0_15 = arith.constant 0 : index
      %21 = vector.load %arg11[%c0_14, %c0_15] : memref<32x256xf32, #tpu.memory_space<vmem>>, vector<32x256xf32>
      tpu.vector_store %arg11[%c0_14, %c0_15], %20 {strides = array<i32>} : memref<32x256xf32, #tpu.memory_space<vmem>>, vector<32x256xf32>,
    } else {
    }
    %5 = arith.cmpi slt, %arg2, %1 : i32
    %6 = arith.extui %5 : i1 to i32
    %c0_i32_1 = arith.constant 0 : i32
    %7 = arith.cmpi ne, %6, %c0_i32_1 : i32
    scf.if %7 {
      %c0 = arith.constant 0 : index
      %c0_3 = arith.constant 0 : index
      %c0_4 = arith.constant 0 : index
      %11 = vector.load %arg5[%c0, %c0_3, %c0_4] : memref<1x32x256xf32, #tpu.memory_space<vmem>>, vector<1x32x256xf32>
      %12 = vector.shape_cast %11 : vector<1x32x256xf32> to vector<32x256xf32>
      %c0_5 = arith.constant 0 : index
      %c0_6 = arith.constant 0 : index
      %c0_7 = arith.constant 0 : index
      %13 = vector.load %arg6[%c0_5, %c0_6, %c0_7] : memref<1x1x256xf32, #tpu.memory_space<vmem>>, vector<1x1x256xf32>
      %14 = vector.shape_cast %13 : vector<1x1x256xf32> to vector<1x256xf32>
      %15 = vector.broadcast %14 : vector<1x256xf32> to vector<32x256xf32>
      %16 = arith.mulf %12, %15 : vector<32x256xf32>
      %c0_8 = arith.constant 0 : index
      %c0_9 = arith.constant 0 : index
      %17 = vector.load %arg8[%c0_8, %c0_9] : memref<32x256xf32, #tpu.memory_space<vmem>>, vector<32x256xf32>
      %18 = arith.mulf %17, %16 : vector<32x256xf32>
      %cst = arith.constant dense<0.000000e+00> : vector<256xf32>
      %19 = vector.multi_reduction <add>, %18, %cst [0] : vector<32x256xf32> to vector<256xf32>
      %20 = vector.shape_cast %19 : vector<256xf32> to vector<1x256xf32>
      %c0_10 = arith.constant 0 : index
      %c0_11 = arith.constant 0 : index
      %21 = vector.load %arg9[%c0_10, %c0_11] : memref<1x256xf32, #tpu.memory_space<vmem>>, vector<1x256xf32>
      %22 = arith.maximumf %21, %20 : vector<1x256xf32>
      %23 = arith.subf %21, %22 : vector<1x256xf32>
      %24 = math.exp %23 : vector<1x256xf32>
      %25 = arith.subf %20, %22 : vector<1x256xf32>
      %26 = math.exp %25 : vector<1x256xf32>
      %c0_12 = arith.constant 0 : index
      %c0_13 = arith.constant 0 : index
      %27 = vector.load %arg10[%c0_12, %c0_13] : memref<1x256xf32, #tpu.memory_space<vmem>>, vector<1x256xf32>
      %28 = arith.mulf %24, %27 : vector<1x256xf32>
      %29 = arith.addf %28, %26 : vector<1x256xf32>
      %c0_14 = arith.constant 0 : index
      %c0_15 = arith.constant 0 : index
      %30 = vector.load %arg10[%c0_14, %c0_15] : memref<1x256xf32, #tpu.memory_space<vmem>>, vector<1x256xf32>
      tpu.vector_store %arg10[%c0_14, %c0_15], %29 {strides = array<i32>} : memref<1x256xf32, #tpu.memory_space<vmem>>, vector<1x256xf32>,
      %c0_16 = arith.constant 0 : index
      %c0_17 = arith.constant 0 : index
      %31 = vector.load %arg11[%c0_16, %c0_17] : memref<32x256xf32, #tpu.memory_space<vmem>>, vector<32x256xf32>
      %32 = vector.broadcast %24 : vector<1x256xf32> to vector<32x256xf32>
      %33 = arith.mulf %32, %31 : vector<32x256xf32>
      %34 = vector.broadcast %26 : vector<1x256xf32> to vector<32x256xf32>
      %35 = arith.mulf %34, %16 : vector<32x256xf32>
      %36 = arith.addf %33, %35 : vector<32x256xf32>
      %c0_18 = arith.constant 0 : index
      %c0_19 = arith.constant 0 : index
      %37 = vector.load %arg11[%c0_18, %c0_19] : memref<32x256xf32, #tpu.memory_space<vmem>>, vector<32x256xf32>
      tpu.vector_store %arg11[%c0_18, %c0_19], %36 {strides = array<i32>} : memref<32x256xf32, #tpu.memory_space<vmem>>, vector<32x256xf32>,
      %c0_20 = arith.constant 0 : index
      %c0_21 = arith.constant 0 : index
      %38 = vector.load %arg9[%c0_20, %c0_21] : memref<1x256xf32, #tpu.memory_space<vmem>>, vector<1x256xf32>
      tpu.vector_store %arg9[%c0_20, %c0_21], %22 {strides = array<i32>} : memref<1x256xf32, #tpu.memory_space<vmem>>, vector<1x256xf32>,
    } else {
    }
    %c2_i32 = arith.constant 2 : i32
    %8 = arith.cmpi eq, %arg2, %c2_i32 : i32
    %9 = arith.extui %8 : i1 to i32
    %c0_i32_2 = arith.constant 0 : i32
    %10 = arith.cmpi ne, %9, %c0_i32_2 : i32
    scf.if %10 {
      %c0 = arith.constant 0 : index
      %c0_3 = arith.constant 0 : index
      %11 = vector.load %arg11[%c0, %c0_3] : memref<32x256xf32, #tpu.memory_space<vmem>>, vector<32x256xf32>
      %c0_4 = arith.constant 0 : index
      %c0_5 = arith.constant 0 : index
      %12 = vector.load %arg10[%c0_4, %c0_5] : memref<1x256xf32, #tpu.memory_space<vmem>>, vector<1x256xf32>
      %13 = tpu.reciprocal %12 : vector<1x256xf32> -> vector<1x256xf32>
      %14 = vector.broadcast %13 : vector<1x256xf32> to vector<32x256xf32>
      %15 = arith.mulf %11, %14 : vector<32x256xf32>
      %c0_6 = arith.constant 0 : index
      %c0_7 = arith.constant 0 : index
      %c0_8 = arith.constant 0 : index
      %16 = vector.load %arg7[%c0_6, %c0_7, %c0_8] : memref<1x32x256xf32, #tpu.memory_space<vmem>>, vector<1x32x256xf32>
      %17 = vector.shape_cast %16 : vector<1x32x256xf32> to vector<32x256xf32>
      %18 = vector.shape_cast %15 : vector<32x256xf32> to vector<1x32x256xf32>
      tpu.vector_store %arg7[%c0_6, %c0_7, %c0_8], %18 {strides = array<i32>} : memref<1x32x256xf32, #tpu.memory_space<vmem>>, vector<1x32x256xf32>,
    } else {
    }
    return
  }
  func.func @transform_0(%arg0: i32, %arg1: i32, %arg2: i32, %arg3: memref<2xi32, #tpu.memory_space<smem>>, %arg4: memref<2xi32, #tpu.memory_space<smem>>) -> (i32, i32, i32) {
    %0 = arith.index_cast %arg0 : i32 to index
    %1 = memref.load %arg3[%0] : memref<2xi32, #tpu.memory_space<smem>>
    %2 = arith.index_cast %arg0 : i32 to index
    %3 = memref.load %arg4[%2] : memref<2xi32, #tpu.memory_space<smem>>
    %c1_i32 = arith.constant 1 : i32
    %4 = arith.subi %3, %c1_i32 : i32
    %5 = arith.minsi %arg2, %4 : i32
    %6 = arith.addi %1, %5 : i32
    %c0_i32 = arith.constant 0 : i32
    %c0_i32_0 = arith.constant 0 : i32
    return %6, %c0_i32, %arg1 : i32, i32, i32
  }
  func.func @transform_1(%arg0: i32, %arg1: i32, %arg2: i32, %arg3: memref<2xi32, #tpu.memory_space<smem>>, %arg4: memref<2xi32, #tpu.memory_space<smem>>) -> (i32, i32, i32) {
    %0 = arith.index_cast %arg0 : i32 to index
    %1 = memref.load %arg3[%0] : memref<2xi32, #tpu.memory_space<smem>>
    %2 = arith.index_cast %arg0 : i32 to index
    %3 = memref.load %arg4[%2] : memref<2xi32, #tpu.memory_space<smem>>
    %c1_i32 = arith.constant 1 : i32
    %4 = arith.subi %3, %c1_i32 : i32
    %5 = arith.minsi %arg2, %4 : i32
    %6 = arith.addi %1, %5 : i32
    %c0_i32 = arith.constant 0 : i32
    %c0_i32_0 = arith.constant 0 : i32
    return %6, %c0_i32, %arg1 : i32, i32, i32
  }
  func.func @transform_2(%arg0: i32, %arg1: i32, %arg2: i32, %arg3: memref<2xi32, #tpu.memory_space<smem>>, %arg4: memref<2xi32, #tpu.memory_space<smem>>) -> (i32, i32, i32) {
    %c0_i32 = arith.constant 0 : i32
    %c0_i32_0 = arith.constant 0 : i32
    return %arg0, %c0_i32, %arg1 : i32, i32, i32
  }
}

</mosaic_0001>

<llo_original>
// kernel: hete_where2comm_fuse_forward.2
$region0: #{hete_where2comm_fuse_forward.2}
  #allocation0 [shape = 'u32[]', space=smem, size = 0x4, offset = 0x4, fixed_abs, tag = 'smem constant byte address 0x4 - core index']
  #allocation1 [shape = 'u32[72,128]{1,0:T(1,128)}', space=vmem, size = 0x9000, scoped, tag = 'internal scratch']
  %s0 = inlined_call_operand.vmem [shape: f32[5,2,20,20], index: 0, kind: input, shape index: {}]
  %s1 = inlined_call_operand.vmem [shape: f32[5,16,16], index: 1, kind: output, shape index: {0}]
  %s2 = inlined_call_operand.hbm [shape: f32[1,1], index: 2, kind: output, shape index: {1}]
  %3 = xla_tuple %s1, %s2
  %s4 = sld [smem:[#allocation0]]
  $region22: #{hete_where2comm_fuse_forward.2} parent=0
    _
  %s6 = ssub.s32 1, %s4
  %s7 = scalar_select 0, %s6, %s4
  $region1: #{hete_where2comm_fuse_forward.2} parent=0
    #allocation2 [shape = 'u8[512]{0}', space=vmem, size = 0x400, scoped, tag = 'output window, operand 1, single buffered']
    #allocation3 [shape = 's32[1]{0}', space=sflag, size = 0x4, scoped, tag = 'scoped memory for hete_where2comm_fuse_forward.2']
    %8 = vsyncpa [#allocation3], 0
    // Predicated region
    $region2: #{hete_where2comm_fuse_forward.2} parent=1 // pred_check
      _
    $region3: #{hete_where2comm_fuse_forward.2} parent=1 // pred_check_branch
      %10 = sbr.rel (0) target = $region5
    $region4: #{hete_where2comm_fuse_forward.2} parent=1 // pred_region
      _
    $region5: #{hete_where2comm_fuse_forward.2} parent=1 // pred_fallthru
      _
    %v11 = vld [vmem:[%s0] sm:$0xff]
    %v12 = vld [vmem:[%s0 + $0x8] sm:$0xff]
    %v13 = vld [vmem:[%s0 + $0x10] sm:$0xf]
    %v14 = vld [vmem:[%s0 + $0x30] sm:$0xff]
    %v15 = vld [vmem:[%s0 + $0x38] sm:$0xff]
    %v16 = vld [vmem:[%s0 + $0x40] sm:$0xf]
    %v17 = vld [vmem:[%s0 + $0x60] sm:$0xff]
    %v18 = vld [vmem:[%s0 + $0x68] sm:$0xff]
    %v19 = vld [vmem:[%s0 + $0x70] sm:$0xf]
    %v20 = vld [vmem:[%s0 + $0x90] sm:$0xff]
    %v21 = vld [vmem:[%s0 + $0x98] sm:$0xff]
    %v22 = vld [vmem:[%s0 + $0xa0] sm:$0xf]
    %v23 = vld [vmem:[%s0 + $0xc0] sm:$0xff]
    %v24 = vld [vmem:[%s0 + $0xc8] sm:$0xff]
    %v25 = vld [vmem:[%s0 + $0xd0] sm:$0xf]
    %v26 = vxor.u32 %v11, 2147483648
    %v27 = vxor.u32 %v12, 2147483648
    %v28 = vxor.u32 %v13, 2147483648
    %v29 = vxor.u32 %v14, 2147483648
    %v30 = vxor.u32 %v15, 2147483648
    %v31 = vxor.u32 %v16, 2147483648
    %v32 = vxor.u32 %v17, 2147483648
    %v33 = vxor.u32 %v18, 2147483648
    %v34 = vxor.u32 %v19, 2147483648
    %v35 = vxor.u32 %v20, 2147483648
    %v36 = vxor.u32 %v21, 2147483648
    %v37 = vxor.u32 %v22, 2147483648
    %v38 = vxor.u32 %v23, 2147483648
    %v39 = vxor.u32 %v24, 2147483648
    %v40 = vxor.u32 %v25, 2147483648
    %v41 = vmul.f32 %v26, 1.442695
    %v42 = vpow.pop %v41
    %v43 = vmul.f32 %v27, 1.442695
    %v44 = vpow.pop %v43
    %v45 = vmul.f32 %v28, 1.442695
    %v46 = vpow.pop %v45
    %v47 = vmul.f32 %v29, 1.442695
    %v48 = vpow.pop %v47
    %v49 = vmul.f32 %v30, 1.442695
    %v50 = vpow.pop %v49
    %v51 = vmul.f32 %v31, 1.442695
    %v52 = vpow.pop %v51
    %v53 = vmul.f32 %v32, 1.442695
    %v54 = vpow.pop %v53
    %v55 = vmul.f32 %v33, 1.442695
    %v56 = vpow.pop %v55
    %v57 = vmul.f32 %v34, 1.442695
    %v58 = vpow.pop %v57
    %v59 = vmul.f32 %v35, 1.442695
    %v60 = vpow.pop %v59
    %v61 = vmul.f32 %v36, 1.442695
    %v62 = vpow.pop %v61
    %v63 = vmul.f32 %v37, 1.442695
    %v64 = vpow.pop %v63
    %v65 = vmul.f32 %v38, 1.442695
    %v66 = vpow.pop %v65
    %v67 = vmul.f32 %v39, 1.442695
    %v68 = vpow.pop %v67
    %v69 = vmul.f32 %v40, 1.442695
    %v70 = vpow.pop %v69
    %v71 = vadd.f32 %v42, 1.0
    %v72 = vadd.f32 %v44, 1.0
    %v73 = vadd.f32 %v46, 1.0
    %v74 = vadd.f32 %v48, 1.0
    %v75 = vadd.f32 %v50, 1.0
    %v76 = vadd.f32 %v52, 1.0
    %v77 = vadd.f32 %v54, 1.0
    %v78 = vadd.f32 %v56, 1.0
    %v79 = vadd.f32 %v58, 1.0
    %v80 = vadd.f32 %v60, 1.0
    %v81 = vadd.f32 %v62, 1.0
    %v82 = vadd.f32 %v64, 1.0
    %v83 = vadd.f32 %v66, 1.0
    %v84 = vadd.f32 %v68, 1.0
    %v85 = vadd.f32 %v70, 1.0
    %v86 = vrcp.pop %v71
    %v87 = vmul.f32 %v71, %v86
    %v88 = vsub.f32 1.0, %v87
    %v89 = vmul.f32 %v86, %v88
    %v90 = vadd.f32 %v86, %v89
    %vm91 = vweird.f32 %v71
    %vm92 = vweird.f32 %v86
    %vm93 = vmor %vm91, %vm92
    %v94 = vsel %vm93, %v86, %v90
    %v95 = vand.u32 2147483647, %v71
    %vm96 = vcmp.eq.f32.partialorder %v95, 8.507059e+37
    %v97 = vand.u32 %v71, 2147483648
    %v98 = vor.u32 1.1754944e-38, %v97
    %v99 = vsel %vm96, %v98, %v94
    %v100 = vmul.f32 1.0, %v99
    %v101 = vrcp.pop %v72
    %v102 = vmul.f32 %v72, %v101
    %v103 = vsub.f32 1.0, %v102
    %v104 = vmul.f32 %v101, %v103
    %v105 = vadd.f32 %v101, %v104
    %vm106 = vweird.f32 %v72
    %vm107 = vweird.f32 %v101
    %vm108 = vmor %vm106, %vm107
    %v109 = vsel %vm108, %v101, %v105
    %v110 = vand.u32 2147483647, %v72
    %vm111 = vcmp.eq.f32.partialorder %v110, 8.507059e+37
    %v112 = vand.u32 %v72, 2147483648
    %v113 = vor.u32 1.1754944e-38, %v112
    %v114 = vsel %vm111, %v113, %v109
    %v115 = vmul.f32 1.0, %v114
    %v116 = vrcp.pop %v73
    %v117 = vmul.f32 %v73, %v116
    %v118 = vsub.f32 1.0, %v117
    %v119 = vmul.f32 %v116, %v118
    %v120 = vadd.f32 %v116, %v119
    %vm121 = vweird.f32 %v73
    %vm122 = vweird.f32 %v116
    %vm123 = vmor %vm121, %vm122
    %v124 = vsel %vm123, %v116, %v120
    %v125 = vand.u32 2147483647, %v73
    %vm126 = vcmp.eq.f32.partialorder %v125, 8.507059e+37
    %v127 = vand.u32 %v73, 2147483648
    %v128 = vor.u32 1.1754944e-38, %v127
    %v129 = vsel %vm126, %v128, %v124
    %v130 = vmul.f32 1.0, %v129
    %v131 = vrcp.pop %v74
    %v132 = vmul.f32 %v74, %v131
    %v133 = vsub.f32 1.0, %v132
    %v134 = vmul.f32 %v131, %v133
    %v135 = vadd.f32 %v131, %v134
    %vm136 = vweird.f32 %v74
    %vm137 = vweird.f32 %v131
    %vm138 = vmor %vm136, %vm137
    %v139 = vsel %vm138, %v131, %v135
    %v140 = vand.u32 2147483647, %v74
    %vm141 = vcmp.eq.f32.partialorder %v140, 8.507059e+37
    %v142 = vand.u32 %v74, 2147483648
    %v143 = vor.u32 1.1754944e-38, %v142
    %v144 = vsel %vm141, %v143, %v139
    %v145 = vmul.f32 1.0, %v144
    %v146 = vrcp.pop %v75
    %v147 = vmul.f32 %v75, %v146
    %v148 = vsub.f32 1.0, %v147
    %v149 = vmul.f32 %v146, %v148
    %v150 = vadd.f32 %v146, %v149
    %vm151 = vweird.f32 %v75
    %vm152 = vweird.f32 %v146
    %vm153 = vmor %vm151, %vm152
    %v154 = vsel %vm153, %v146, %v150
    %v155 = vand.u32 2147483647, %v75
    %vm156 = vcmp.eq.f32.partialorder %v155, 8.507059e+37
    %v157 = vand.u32 %v75, 2147483648
    %v158 = vor.u32 1.1754944e-38, %v157
    %v159 = vsel %vm156, %v158, %v154
    %v160 = vmul.f32 1.0, %v159
    %v161 = vrcp.pop %v76
    %v162 = vmul.f32 %v76, %v161
    %v163 = vsub.f32 1.0, %v162
    %v164 = vmul.f32 %v161, %v163
    %v165 = vadd.f32 %v161, %v164
    %vm166 = vweird.f32 %v76
    %vm167 = vweird.f32 %v161
    %vm168 = vmor %vm166, %vm167
    %v169 = vsel %vm168, %v161, %v165
    %v170 = vand.u32 2147483647, %v76
    %vm171 = vcmp.eq.f32.partialorder %v170, 8.507059e+37
    %v172 = vand.u32 %v76, 2147483648
    %v173 = vor.u32 1.1754944e-38, %v172
    %v174 = vsel %vm171, %v173, %v169
    %v175 = vmul.f32 1.0, %v174
    %v176 = vrcp.pop %v77
    %v177 = vmul.f32 %v77, %v176
    %v178 = vsub.f32 1.0, %v177
    %v179 = vmul.f32 %v176, %v178
    %v180 = vadd.f32 %v176, %v179
    %vm181 = vweird.f32 %v77
    %vm182 = vweird.f32 %v176
    %vm183 = vmor %vm181, %vm182
    %v184 = vsel %vm183, %v176, %v180
    %v185 = vand.u32 2147483647, %v77
    %vm186 = vcmp.eq.f32.partialorder %v185, 8.507059e+37
    %v187 = vand.u32 %v77, 2147483648
    %v188 = vor.u32 1.1754944e-38, %v187
    %v189 = vsel %vm186, %v188, %v184
    %v190 = vmul.f32 1.0, %v189
    %v191 = vrcp.pop %v78
    %v192 = vmul.f32 %v78, %v191
    %v193 = vsub.f32 1.0, %v192
    %v194 = vmul.f32 %v191, %v193
    %v195 = vadd.f32 %v191, %v194
    %vm196 = vweird.f32 %v78
    %vm197 = vweird.f32 %v191
    %vm198 = vmor %vm196, %vm197
    %v199 = vsel %vm198, %v191, %v195
    %v200 = vand.u32 2147483647, %v78
    %vm201 = vcmp.eq.f32.partialorder %v200, 8.507059e+37
    %v202 = vand.u32 %v78, 2147483648
    %v203 = vor.u32 1.1754944e-38, %v202
    %v204 = vsel %vm201, %v203, %v199
    %v205 = vmul.f32 1.0, %v204
    %v206 = vrcp.pop %v79
    %v207 = vmul.f32 %v79, %v206
    %v208 = vsub.f32 1.0, %v207
    %v209 = vmul.f32 %v206, %v208
    %v210 = vadd.f32 %v206, %v209
    %vm211 = vweird.f32 %v79
    %vm212 = vweird.f32 %v206
    %vm213 = vmor %vm211, %vm212
    %v214 = vsel %vm213, %v206, %v210
    %v215 = vand.u32 2147483647, %v79
    %vm216 = vcmp.eq.f32.partialorder %v215, 8.507059e+37
    %v217 = vand.u32 %v79, 2147483648
    %v218 = vor.u32 1.1754944e-38, %v217
    %v219 = vsel %vm216, %v218, %v214
    %v220 = vmul.f32 1.0, %v219
    %v221 = vrcp.pop %v80
    %v222 = vmul.f32 %v80, %v221
    %v223 = vsub.f32 1.0, %v222
    %v224 = vmul.f32 %v221, %v223
    %v225 = vadd.f32 %v221, %v224
    %vm226 = vweird.f32 %v80
    %vm227 = vweird.f32 %v221
    %vm228 = vmor %vm226, %vm227
    %v229 = vsel %vm228, %v221, %v225
    %v230 = vand.u32 2147483647, %v80
    %vm231 = vcmp.eq.f32.partialorder %v230, 8.507059e+37
    %v232 = vand.u32 %v80, 2147483648
    %v233 = vor.u32 1.1754944e-38, %v232
    %v234 = vsel %vm231, %v233, %v229
    %v235 = vmul.f32 1.0, %v234
    %v236 = vrcp.pop %v81
    %v237 = vmul.f32 %v81, %v236
    %v238 = vsub.f32 1.0, %v237
    %v239 = vmul.f32 %v236, %v238
    %v240 = vadd.f32 %v236, %v239
    %vm241 = vweird.f32 %v81
    %vm242 = vweird.f32 %v236
    %vm243 = vmor %vm241, %vm242
    %v244 = vsel %vm243, %v236, %v240
    %v245 = vand.u32 2147483647, %v81
    %vm246 = vcmp.eq.f32.partialorder %v245, 8.507059e+37
    %v247 = vand.u32 %v81, 2147483648
    %v248 = vor.u32 1.1754944e-38, %v247
    %v249 = vsel %vm246, %v248, %v244
    %v250 = vmul.f32 1.0, %v249
    %v251 = vrcp.pop %v82
    %v252 = vmul.f32 %v82, %v251
    %v253 = vsub.f32 1.0, %v252
    %v254 = vmul.f32 %v251, %v253
    %v255 = vadd.f32 %v251, %v254
    %vm256 = vweird.f32 %v82
    %vm257 = vweird.f32 %v251
    %vm258 = vmor %vm256, %vm257
    %v259 = vsel %vm258, %v251, %v255
    %v260 = vand.u32 2147483647, %v82
    %vm261 = vcmp.eq.f32.partialorder %v260, 8.507059e+37
    %v262 = vand.u32 %v82, 2147483648
    %v263 = vor.u32 1.1754944e-38, %v262
    %v264 = vsel %vm261, %v263, %v259
    %v265 = vmul.f32 1.0, %v264
    %v266 = vrcp.pop %v83
    %v267 = vmul.f32 %v83, %v266
    %v268 = vsub.f32 1.0, %v267
    %v269 = vmul.f32 %v266, %v268
    %v270 = vadd.f32 %v266, %v269
    %vm271 = vweird.f32 %v83
    %vm272 = vweird.f32 %v266
    %vm273 = vmor %vm271, %vm272
    %v274 = vsel %vm273, %v266, %v270
    %v275 = vand.u32 2147483647, %v83
    %vm276 = vcmp.eq.f32.partialorder %v275, 8.507059e+37
    %v277 = vand.u32 %v83, 2147483648
    %v278 = vor.u32 1.1754944e-38, %v277
    %v279 = vsel %vm276, %v278, %v274
    %v280 = vmul.f32 1.0, %v279
    %v281 = vrcp.pop %v84
    %v282 = vmul.f32 %v84, %v281
    %v283 = vsub.f32 1.0, %v282
    %v284 = vmul.f32 %v281, %v283
    %v285 = vadd.f32 %v281, %v284
    %vm286 = vweird.f32 %v84
    %vm287 = vweird.f32 %v281
    %vm288 = vmor %vm286, %vm287
    %v289 = vsel %vm288, %v281, %v285
    %v290 = vand.u32 2147483647, %v84
    %vm291 = vcmp.eq.f32.partialorder %v290, 8.507059e+37
    %v292 = vand.u32 %v84, 2147483648
    %v293 = vor.u32 1.1754944e-38, %v292
    %v294 = vsel %vm291, %v293, %v289
    %v295 = vmul.f32 1.0, %v294
    %v296 = vrcp.pop %v85
    %v297 = vmul.f32 %v85, %v296
    %v298 = vsub.f32 1.0, %v297
    %v299 = vmul.f32 %v296, %v298
    %v300 = vadd.f32 %v296, %v299
    %vm301 = vweird.f32 %v85
    %vm302 = vweird.f32 %v296
    %vm303 = vmor %vm301, %vm302
    %v304 = vsel %vm303, %v296, %v300
    %v305 = vand.u32 2147483647, %v85
    %vm306 = vcmp.eq.f32.partialorder %v305, 8.507059e+37
    %v307 = vand.u32 %v85, 2147483648
    %v308 = vor.u32 1.1754944e-38, %v307
    %v309 = vsel %vm306, %v308, %v304
    %v310 = vmul.f32 1.0, %v309
    %s311 = scalar_lea.vmem %s0, 24
    %v312 = vld [vmem:[%s311] sm:$0xff]
    %v313 = vld [vmem:[%s311 + $0x8] sm:$0xff]
    %v314 = vld [vmem:[%s311 + $0x10] sm:$0xf]
    %v315 = vld [vmem:[%s311 + $0x30] sm:$0xff]
    %v316 = vld [vmem:[%s311 + $0x38] sm:$0xff]
    %v317 = vld [vmem:[%s311 + $0x40] sm:$0xf]
    %v318 = vld [vmem:[%s311 + $0x60] sm:$0xff]
    %v319 = vld [vmem:[%s311 + $0x68] sm:$0xff]
    %v320 = vld [vmem:[%s311 + $0x70] sm:$0xf]
    %v321 = vld [vmem:[%s311 + $0x90] sm:$0xff]
    %v322 = vld [vmem:[%s311 + $0x98] sm:$0xff]
    %v323 = vld [vmem:[%s311 + $0xa0] sm:$0xf]
    %v324 = vld [vmem:[%s311 + $0xc0] sm:$0xff]
    %v325 = vld [vmem:[%s311 + $0xc8] sm:$0xff]
    %v326 = vld [vmem:[%s311 + $0xd0] sm:$0xf]
    %v327 = vxor.u32 %v312, 2147483648
    %v328 = vxor.u32 %v313, 2147483648
    %v329 = vxor.u32 %v314, 2147483648
    %v330 = vxor.u32 %v315, 2147483648
    %v331 = vxor.u32 %v316, 2147483648
    %v332 = vxor.u32 %v317, 2147483648
    %v333 = vxor.u32 %v318, 2147483648
    %v334 = vxor.u32 %v319, 2147483648
    %v335 = vxor.u32 %v320, 2147483648
    %v336 = vxor.u32 %v321, 2147483648
    %v337 = vxor.u32 %v322, 2147483648
    %v338 = vxor.u32 %v323, 2147483648
    %v339 = vxor.u32 %v324, 2147483648
    %v340 = vxor.u32 %v325, 2147483648
    %v341 = vxor.u32 %v326, 2147483648
    %v342 = vmul.f32 %v327, 1.442695
    %v343 = vpow.pop %v342
    %v344 = vmul.f32 %v328, 1.442695
    %v345 = vpow.pop %v344
    %v346 = vmul.f32 %v329, 1.442695
    %v347 = vpow.pop %v346
    %v348 = vmul.f32 %v330, 1.442695
    %v349 = vpow.pop %v348
    %v350 = vmul.f32 %v331, 1.442695
    %v351 = vpow.pop %v350
    %v352 = vmul.f32 %v332, 1.442695
    %v353 = vpow.pop %v352
    %v354 = vmul.f32 %v333, 1.442695
    %v355 = vpow.pop %v354
    %v356 = vmul.f32 %v334, 1.442695
    %v357 = vpow.pop %v356
    %v358 = vmul.f32 %v335, 1.442695
    %v359 = vpow.pop %v358
    %v360 = vmul.f32 %v336, 1.442695
    %v361 = vpow.pop %v360
    %v362 = vmul.f32 %v337, 1.442695
    %v363 = vpow.pop %v362
    %v364 = vmul.f32 %v338, 1.442695
    %v365 = vpow.pop %v364
    %v366 = vmul.f32 %v339, 1.442695
    %v367 = vpow.pop %v366
    %v368 = vmul.f32 %v340, 1.442695
    %v369 = vpow.pop %v368
    %v370 = vmul.f32 %v341, 1.442695
    %v371 = vpow.pop %v370
    %v372 = vadd.f32 %v343, 1.0
    %v373 = vadd.f32 %v345, 1.0
    %v374 = vadd.f32 %v347, 1.0
    %v375 = vadd.f32 %v349, 1.0
    %v376 = vadd.f32 %v351, 1.0
    %v377 = vadd.f32 %v353, 1.0
    %v378 = vadd.f32 %v355, 1.0
    %v379 = vadd.f32 %v357, 1.0
    %v380 = vadd.f32 %v359, 1.0
    %v381 = vadd.f32 %v361, 1.0
    %v382 = vadd.f32 %v363, 1.0
    %v383 = vadd.f32 %v365, 1.0
    %v384 = vadd.f32 %v367, 1.0
    %v385 = vadd.f32 %v369, 1.0
    %v386 = vadd.f32 %v371, 1.0
    %v387 = vrcp.pop %v372
    %v388 = vmul.f32 %v372, %v387
    %v389 = vsub.f32 1.0, %v388
    %v390 = vmul.f32 %v387, %v389
    %v391 = vadd.f32 %v387, %v390
    %vm392 = vweird.f32 %v372
    %vm393 = vweird.f32 %v387
    %vm394 = vmor %vm392, %vm393
    %v395 = vsel %vm394, %v387, %v391
    %v396 = vand.u32 2147483647, %v372
    %vm397 = vcmp.eq.f32.partialorder %v396, 8.507059e+37
    %v398 = vand.u32 %v372, 2147483648
    %v399 = vor.u32 1.1754944e-38, %v398
    %v400 = vsel %vm397, %v399, %v395
    %v401 = vmul.f32 1.0, %v400
    %v402 = vrcp.pop %v373
    %v403 = vmul.f32 %v373, %v402
    %v404 = vsub.f32 1.0, %v403
    %v405 = vmul.f32 %v402, %v404
    %v406 = vadd.f32 %v402, %v405
    %vm407 = vweird.f32 %v373
    %vm408 = vweird.f32 %v402
    %vm409 = vmor %vm407, %vm408
    %v410 = vsel %vm409, %v402, %v406
    %v411 = vand.u32 2147483647, %v373
    %vm412 = vcmp.eq.f32.partialorder %v411, 8.507059e+37
    %v413 = vand.u32 %v373, 2147483648
    %v414 = vor.u32 1.1754944e-38, %v413
    %v415 = vsel %vm412, %v414, %v410
    %v416 = vmul.f32 1.0, %v415
    %v417 = vrcp.pop %v374
    %v418 = vmul.f32 %v374, %v417
    %v419 = vsub.f32 1.0, %v418
    %v420 = vmul.f32 %v417, %v419
    %v421 = vadd.f32 %v417, %v420
    %vm422 = vweird.f32 %v374
    %vm423 = vweird.f32 %v417
    %vm424 = vmor %vm422, %vm423
    %v425 = vsel %vm424, %v417, %v421
    %v426 = vand.u32 2147483647, %v374
    %vm427 = vcmp.eq.f32.partialorder %v426, 8.507059e+37
    %v428 = vand.u32 %v374, 2147483648
    %v429 = vor.u32 1.1754944e-38, %v428
    %v430 = vsel %vm427, %v429, %v425
    %v431 = vmul.f32 1.0, %v430
    %v432 = vrcp.pop %v375
    %v433 = vmul.f32 %v375, %v432
    %v434 = vsub.f32 1.0, %v433
    %v435 = vmul.f32 %v432, %v434
    %v436 = vadd.f32 %v432, %v435
    %vm437 = vweird.f32 %v375
    %vm438 = vweird.f32 %v432
    %vm439 = vmor %vm437, %vm438
    %v440 = vsel %vm439, %v432, %v436
    %v441 = vand.u32 2147483647, %v375
    %vm442 = vcmp.eq.f32.partialorder %v441, 8.507059e+37
    %v443 = vand.u32 %v375, 2147483648
    %v444 = vor.u32 1.1754944e-38, %v443
    %v445 = vsel %vm442, %v444, %v440
    %v446 = vmul.f32 1.0, %v445
    %v447 = vrcp.pop %v376
    %v448 = vmul.f32 %v376, %v447
    %v449 = vsub.f32 1.0, %v448
    %v450 = vmul.f32 %v447, %v449
    %v451 = vadd.f32 %v447, %v450
    %vm452 = vweird.f32 %v376
    %vm453 = vweird.f32 %v447
    %vm454 = vmor %vm452, %vm453
    %v455 = vsel %vm454, %v447, %v451
    %v456 = vand.u32 2147483647, %v376
    %vm457 = vcmp.eq.f32.partialorder %v456, 8.507059e+37
    %v458 = vand.u32 %v376, 2147483648
    %v459 = vor.u32 1.1754944e-38, %v458
    %v460 = vsel %vm457, %v459, %v455
    %v461 = vmul.f32 1.0, %v460
    %v462 = vrcp.pop %v377
    %v463 = vmul.f32 %v377, %v462
    %v464 = vsub.f32 1.0, %v463
    %v465 = vmul.f32 %v462, %v464
    %v466 = vadd.f32 %v462, %v465
    %vm467 = vweird.f32 %v377
    %vm468 = vweird.f32 %v462
    %vm469 = vmor %vm467, %vm468
    %v470 = vsel %vm469, %v462, %v466
    %v471 = vand.u32 2147483647, %v377
    %vm472 = vcmp.eq.f32.partialorder %v471, 8.507059e+37
    %v473 = vand.u32 %v377, 2147483648
    %v474 = vor.u32 1.1754944e-38, %v473
    %v475 = vsel %vm472, %v474, %v470
    %v476 = vmul.f32 1.0, %v475
    %v477 = vrcp.pop %v378
    %v478 = vmul.f32 %v378, %v477
    %v479 = vsub.f32 1.0, %v478
    %v480 = vmul.f32 %v477, %v479
    %v481 = vadd.f32 %v477, %v480
    %vm482 = vweird.f32 %v378
    %vm483 = vweird.f32 %v477
    %vm484 = vmor %vm482, %vm483
    %v485 = vsel %vm484, %v477, %v481
    %v486 = vand.u32 2147483647, %v378
    %vm487 = vcmp.eq.f32.partialorder %v486, 8.507059e+37
    %v488 = vand.u32 %v378, 2147483648
    %v489 = vor.u32 1.1754944e-38, %v488
    %v490 = vsel %vm487, %v489, %v485
    %v491 = vmul.f32 1.0, %v490
    %v492 = vrcp.pop %v379
    %v493 = vmul.f32 %v379, %v492
    %v494 = vsub.f32 1.0, %v493
    %v495 = vmul.f32 %v492, %v494
    %v496 = vadd.f32 %v492, %v495
    %vm497 = vweird.f32 %v379
    %vm498 = vweird.f32 %v492
    %vm499 = vmor %vm497, %vm498
    %v500 = vsel %vm499, %v492, %v496
    %v501 = vand.u32 2147483647, %v379
    %vm502 = vcmp.eq.f32.partialorder %v501, 8.507059e+37
    %v503 = vand.u32 %v379, 2147483648
    %v504 = vor.u32 1.1754944e-38, %v503
    %v505 = vsel %vm502, %v504, %v500
    %v506 = vmul.f32 1.0, %v505
    %v507 = vrcp.pop %v380
    %v508 = vmul.f32 %v380, %v507
    %v509 = vsub.f32 1.0, %v508
    %v510 = vmul.f32 %v507, %v509
    %v511 = vadd.f32 %v507, %v510
    %vm512 = vweird.f32 %v380
    %vm513 = vweird.f32 %v507
    %vm514 = vmor %vm512, %vm513
    %v515 = vsel %vm514, %v507, %v511
    %v516 = vand.u32 2147483647, %v380
    %vm517 = vcmp.eq.f32.partialorder %v516, 8.507059e+37
    %v518 = vand.u32 %v380, 2147483648
    %v519 = vor.u32 1.1754944e-38, %v518
    %v520 = vsel %vm517, %v519, %v515
    %v521 = vmul.f32 1.0, %v520
    %v522 = vrcp.pop %v381
    %v523 = vmul.f32 %v381, %v522
    %v524 = vsub.f32 1.0, %v523
    %v525 = vmul.f32 %v522, %v524
    %v526 = vadd.f32 %v522, %v525
    %vm527 = vweird.f32 %v381
    %vm528 = vweird.f32 %v522
    %vm529 = vmor %vm527, %vm528
    %v530 = vsel %vm529, %v522, %v526
    %v531 = vand.u32 2147483647, %v381
    %vm532 = vcmp.eq.f32.partialorder %v531, 8.507059e+37
    %v533 = vand.u32 %v381, 2147483648
    %v534 = vor.u32 1.1754944e-38, %v533
    %v535 = vsel %vm532, %v534, %v530
    %v536 = vmul.f32 1.0, %v535
    %v537 = vrcp.pop %v382
    %v538 = vmul.f32 %v382, %v537
    %v539 = vsub.f32 1.0, %v538
    %v540 = vmul.f32 %v537, %v539
    %v541 = vadd.f32 %v537, %v540
    %vm542 = vweird.f32 %v382
    %vm543 = vweird.f32 %v537
    %vm544 = vmor %vm542, %vm543
    %v545 = vsel %vm544, %v537, %v541
    %v546 = vand.u32 2147483647, %v382
    %vm547 = vcmp.eq.f32.partialorder %v546, 8.507059e+37
    %v548 = vand.u32 %v382, 2147483648
    %v549 = vor.u32 1.1754944e-38, %v548
    %v550 = vsel %vm547, %v549, %v545
    %v551 = vmul.f32 1.0, %v550
    %v552 = vrcp.pop %v383
    %v553 = vmul.f32 %v383, %v552
    %v554 = vsub.f32 1.0, %v553
    %v555 = vmul.f32 %v552, %v554
    %v556 = vadd.f32 %v552, %v555
    %vm557 = vweird.f32 %v383
    %vm558 = vweird.f32 %v552
    %vm559 = vmor %vm557, %vm558
    %v560 = vsel %vm559, %v552, %v556
    %v561 = vand.u32 2147483647, %v383
    %vm562 = vcmp.eq.f32.partialorder %v561, 8.507059e+37
    %v563 = vand.u32 %v383, 2147483648
    %v564 = vor.u32 1.1754944e-38, %v563
    %v565 = vsel %vm562, %v564, %v560
    %v566 = vmul.f32 1.0, %v565
    %v567 = vrcp.pop %v384
    %v568 = vmul.f32 %v384, %v567
    %v569 = vsub.f32 1.0, %v568
    %v570 = vmul.f32 %v567, %v569
    %v571 = vadd.f32 %v567, %v570
    %vm572 = vweird.f32 %v384
    %vm573 = vweird.f32 %v567
    %vm574 = vmor %vm572, %vm573
    %v575 = vsel %vm574, %v567, %v571
    %v576 = vand.u32 2147483647, %v384
    %vm577 = vcmp.eq.f32.partialorder %v576, 8.507059e+37
    %v578 = vand.u32 %v384, 2147483648
    %v579 = vor.u32 1.1754944e-38, %v578
    %v580 = vsel %vm577, %v579, %v575
    %v581 = vmul.f32 1.0, %v580
    %v582 = vrcp.pop %v385
    %v583 = vmul.f32 %v385, %v582
    %v584 = vsub.f32 1.0, %v583
    %v585 = vmul.f32 %v582, %v584
    %v586 = vadd.f32 %v582, %v585
    %vm587 = vweird.f32 %v385
    %vm588 = vweird.f32 %v582
    %vm589 = vmor %vm587, %vm588
    %v590 = vsel %vm589, %v582, %v586
    %v591 = vand.u32 2147483647, %v385
    %vm592 = vcmp.eq.f32.partialorder %v591, 8.507059e+37
    %v593 = vand.u32 %v385, 2147483648
    %v594 = vor.u32 1.1754944e-38, %v593
    %v595 = vsel %vm592, %v594, %v590
    %v596 = vmul.f32 1.0, %v595
    %v597 = vrcp.pop %v386
    %v598 = vmul.f32 %v386, %v597
    %v599 = vsub.f32 1.0, %v598
    %v600 = vmul.f32 %v597, %v599
    %v601 = vadd.f32 %v597, %v600
    %vm602 = vweird.f32 %v386
    %vm603 = vweird.f32 %v597
    %vm604 = vmor %vm602, %vm603
    %v605 = vsel %vm604, %v597, %v601
    %v606 = vand.u32 2147483647, %v386
    %vm607 = vcmp.eq.f32.partialorder %v606, 8.507059e+37
    %v608 = vand.u32 %v386, 2147483648
    %v609 = vor.u32 1.1754944e-38, %v608
    %v610 = vsel %vm607, %v609, %v605
    %v611 = vmul.f32 1.0, %v610
    %v612 = vmax.f32 %v100, %v401
    %v613 = vmax.f32 %v115, %v416
    %v614 = vmax.f32 %v130, %v431
    %v615 = vmax.f32 %v145, %v446
    %v616 = vmax.f32 %v160, %v461
    %v617 = vmax.f32 %v175, %v476
    %v618 = vmax.f32 %v190, %v491
    %v619 = vmax.f32 %v205, %v506
    %v620 = vmax.f32 %v220, %v521
    %v621 = vmax.f32 %v235, %v536
    %v622 = vmax.f32 %v250, %v551
    %v623 = vmax.f32 %v265, %v566
    %v624 = vmax.f32 %v280, %v581
    %v625 = vmax.f32 %v295, %v596
    %v626 = vmax.f32 %v310, %v611
    %v627 = vmul.f32 %v612, 0.053990968
    %v628 = vmul.f32 %v613, 0.053990968
    %v629 = vmul.f32 %v614, 0.053990968
    %v630 = vmul.f32 %v615, 0.053990968
    %v631 = vmul.f32 %v616, 0.053990968
    %v632 = vmul.f32 %v617, 0.053990968
    %v633 = vmul.f32 %v618, 0.053990968
    %v634 = vmul.f32 %v619, 0.053990968
    %v635 = vmul.f32 %v620, 0.053990968
    %v636 = vmul.f32 %v621, 0.053990968
    %v637 = vmul.f32 %v622, 0.053990968
    %v638 = vmul.f32 %v623, 0.053990968
    %v639 = vmul.f32 %v624, 0.053990968
    %v640 = vmul.f32 %v625, 0.053990968
    %v641 = vmul.f32 %v626, 0.053990968
    %v642 = vmul.f32 %v612, 0.24197072
    %v643 = vmul.f32 %v613, 0.24197072
    %v644 = vmul.f32 %v614, 0.24197072
    %v645 = vmul.f32 %v615, 0.24197072
    %v646 = vmul.f32 %v616, 0.24197072
    %v647 = vmul.f32 %v617, 0.24197072
    %v648 = vmul.f32 %v618, 0.24197072
    %v649 = vmul.f32 %v619, 0.24197072
    %v650 = vmul.f32 %v620, 0.24197072
    %v651 = vmul.f32 %v621, 0.24197072
    %v652 = vmul.f32 %v622, 0.24197072
    %v653 = vmul.f32 %v623, 0.24197072
    %v654 = vmul.f32 %v624, 0.24197072
    %v655 = vmul.f32 %v625, 0.24197072
    %v656 = vmul.f32 %v626, 0.24197072
    %672 = vrot.lane.b32.xlu0 %v642, 127
    %v673 = vpop.permute.xlu0 %672
    %674 = vrot.lane.b32.xlu0 %v643, 127
    %v675 = vpop.permute.xlu0 %674
    %676 = vrot.lane.b32.xlu0 %v644, 127
    %v677 = vpop.permute.xlu0 %676
    %678 = vrot.lane.b32.xlu0 %v645, 127
    %v679 = vpop.permute.xlu0 %678
    %680 = vrot.lane.b32.xlu0 %v646, 127
    %v681 = vpop.permute.xlu0 %680
    %682 = vrot.lane.b32.xlu0 %v647, 127
    %v683 = vpop.permute.xlu0 %682
    %684 = vrot.lane.b32.xlu0 %v648, 127
    %v685 = vpop.permute.xlu0 %684
    %686 = vrot.lane.b32.xlu0 %v649, 127
    %v687 = vpop.permute.xlu0 %686
    %688 = vrot.lane.b32.xlu0 %v650, 127
    %v689 = vpop.permute.xlu0 %688
    %690 = vrot.lane.b32.xlu0 %v651, 127
    %v691 = vpop.permute.xlu0 %690
    %692 = vrot.lane.b32.xlu0 %v652, 127
    %v693 = vpop.permute.xlu0 %692
    %694 = vrot.lane.b32.xlu0 %v653, 127
    %v695 = vpop.permute.xlu0 %694
    %696 = vrot.lane.b32.xlu0 %v654, 127
    %v697 = vpop.permute.xlu0 %696
    %698 = vrot.lane.b32.xlu0 %v655, 127
    %v699 = vpop.permute.xlu0 %698
    %700 = vrot.lane.b32.xlu0 %v656, 127
    %v701 = vpop.permute.xlu0 %700
    %v717 = vadd.f32 %v627, %v673
    %v718 = vadd.f32 %v628, %v675
    %v719 = vadd.f32 %v629, %v677
    %v720 = vadd.f32 %v630, %v679
    %v721 = vadd.f32 %v631, %v681
    %v722 = vadd.f32 %v632, %v683
    %v723 = vadd.f32 %v633, %v685
    %v724 = vadd.f32 %v634, %v687
    %v725 = vadd.f32 %v635, %v689
    %v726 = vadd.f32 %v636, %v691
    %v727 = vadd.f32 %v637, %v693
    %v728 = vadd.f32 %v638, %v695
    %v729 = vadd.f32 %v639, %v697
    %v730 = vadd.f32 %v640, %v699
    %v731 = vadd.f32 %v641, %v701
    %v732 = vmul.f32 %v612, 0.3989423
    %v733 = vmul.f32 %v613, 0.3989423
    %v734 = vmul.f32 %v614, 0.3989423
    %v735 = vmul.f32 %v615, 0.3989423
    %v736 = vmul.f32 %v616, 0.3989423
    %v737 = vmul.f32 %v617, 0.3989423
    %v738 = vmul.f32 %v618, 0.3989423
    %v739 = vmul.f32 %v619, 0.3989423
    %v740 = vmul.f32 %v620, 0.3989423
    %v741 = vmul.f32 %v621, 0.3989423
    %v742 = vmul.f32 %v622, 0.3989423
    %v743 = vmul.f32 %v623, 0.3989423
    %v744 = vmul.f32 %v624, 0.3989423
    %v745 = vmul.f32 %v625, 0.3989423
    %v746 = vmul.f32 %v626, 0.3989423
    %762 = vrot.lane.b32.xlu0 %v732, 126
    %v763 = vpop.permute.xlu0 %762
    %764 = vrot.lane.b32.xlu0 %v733, 126
    %v765 = vpop.permute.xlu0 %764
    %766 = vrot.lane.b32.xlu0 %v734, 126
    %v767 = vpop.permute.xlu0 %766
    %768 = vrot.lane.b32.xlu0 %v735, 126
    %v769 = vpop.permute.xlu0 %768
    %770 = vrot.lane.b32.xlu0 %v736, 126
    %v771 = vpop.permute.xlu0 %770
    %772 = vrot.lane.b32.xlu0 %v737, 126
    %v773 = vpop.permute.xlu0 %772
    %774 = vrot.lane.b32.xlu0 %v738, 126
    %v775 = vpop.permute.xlu0 %774
    %776 = vrot.lane.b32.xlu0 %v739, 126
    %v777 = vpop.permute.xlu0 %776
    %778 = vrot.lane.b32.xlu0 %v740, 126
    %v779 = vpop.permute.xlu0 %778
    %780 = vrot.lane.b32.xlu0 %v741, 126
    %v781 = vpop.permute.xlu0 %780
    %782 = vrot.lane.b32.xlu0 %v742, 126
    %v783 = vpop.permute.xlu0 %782
    %784 = vrot.lane.b32.xlu0 %v743, 126
    %v785 = vpop.permute.xlu0 %784
    %786 = vrot.lane.b32.xlu0 %v744, 126
    %v787 = vpop.permute.xlu0 %786
    %788 = vrot.lane.b32.xlu0 %v745, 126
    %v789 = vpop.permute.xlu0 %788
    %790 = vrot.lane.b32.xlu0 %v746, 126
    %v791 = vpop.permute.xlu0 %790
    %v807 = vadd.f32 %v717, %v763
    %v808 = vadd.f32 %v718, %v765
    %v809 = vadd.f32 %v719, %v767
    %v810 = vadd.f32 %v720, %v769
    %v811 = vadd.f32 %v721, %v771
    %v812 = vadd.f32 %v722, %v773
    %v813 = vadd.f32 %v723, %v775
    %v814 = vadd.f32 %v724, %v777
    %v815 = vadd.f32 %v725, %v779
    %v816 = vadd.f32 %v726, %v781
    %v817 = vadd.f32 %v727, %v783
    %v818 = vadd.f32 %v728, %v785
    %v819 = vadd.f32 %v729, %v787
    %v820 = vadd.f32 %v730, %v789
    %v821 = vadd.f32 %v731, %v791
    %822 = vrot.lane.b32.xlu0 %v642, 125
    %v823 = vpop.permute.xlu0 %822
    %824 = vrot.lane.b32.xlu0 %v643, 125
    %v825 = vpop.permute.xlu0 %824
    %826 = vrot.lane.b32.xlu0 %v644, 125
    %v827 = vpop.permute.xlu0 %826
    %828 = vrot.lane.b32.xlu0 %v645, 125
    %v829 = vpop.permute.xlu0 %828
    %830 = vrot.lane.b32.xlu0 %v646, 125
    %v831 = vpop.permute.xlu0 %830
    %832 = vrot.lane.b32.xlu0 %v647, 125
    %v833 = vpop.permute.xlu0 %832
    %834 = vrot.lane.b32.xlu0 %v648, 125
    %v835 = vpop.permute.xlu0 %834
    %836 = vrot.lane.b32.xlu0 %v649, 125
    %v837 = vpop.permute.xlu0 %836
    %838 = vrot.lane.b32.xlu0 %v650, 125
    %v839 = vpop.permute.xlu0 %838
    %840 = vrot.lane.b32.xlu0 %v651, 125
    %v841 = vpop.permute.xlu0 %840
    %842 = vrot.lane.b32.xlu0 %v652, 125
    %v843 = vpop.permute.xlu0 %842
    %844 = vrot.lane.b32.xlu0 %v653, 125
    %v845 = vpop.permute.xlu0 %844
    %846 = vrot.lane.b32.xlu0 %v654, 125
    %v847 = vpop.permute.xlu0 %846
    %848 = vrot.lane.b32.xlu0 %v655, 125
    %v849 = vpop.permute.xlu0 %848
    %850 = vrot.lane.b32.xlu0 %v656, 125
    %v851 = vpop.permute.xlu0 %850
    %v867 = vadd.f32 %v807, %v823
    %v868 = vadd.f32 %v808, %v825
    %v869 = vadd.f32 %v809, %v827
    %v870 = vadd.f32 %v810, %v829
    %v871 = vadd.f32 %v811, %v831
    %v872 = vadd.f32 %v812, %v833
    %v873 = vadd.f32 %v813, %v835
    %v874 = vadd.f32 %v814, %v837
    %v875 = vadd.f32 %v815, %v839
    %v876 = vadd.f32 %v816, %v841
    %v877 = vadd.f32 %v817, %v843
    %v878 = vadd.f32 %v818, %v845
    %v879 = vadd.f32 %v819, %v847
    %v880 = vadd.f32 %v820, %v849
    %v881 = vadd.f32 %v821, %v851
    %897 = vrot.lane.b32.xlu0 %v627, 124
    %v898 = vpop.permute.xlu0 %897
    %899 = vrot.lane.b32.xlu0 %v628, 124
    %v900 = vpop.permute.xlu0 %899
    %901 = vrot.lane.b32.xlu0 %v629, 124
    %v902 = vpop.permute.xlu0 %901
    %903 = vrot.lane.b32.xlu0 %v630, 124
    %v904 = vpop.permute.xlu0 %903
    %905 = vrot.lane.b32.xlu0 %v631, 124
    %v906 = vpop.permute.xlu0 %905
    %907 = vrot.lane.b32.xlu0 %v632, 124
    %v908 = vpop.permute.xlu0 %907
    %909 = vrot.lane.b32.xlu0 %v633, 124
    %v910 = vpop.permute.xlu0 %909
    %911 = vrot.lane.b32.xlu0 %v634, 124
    %v912 = vpop.permute.xlu0 %911
    %913 = vrot.lane.b32.xlu0 %v635, 124
    %v914 = vpop.permute.xlu0 %913
    %915 = vrot.lane.b32.xlu0 %v636, 124
    %v916 = vpop.permute.xlu0 %915
    %917 = vrot.lane.b32.xlu0 %v637, 124
    %v918 = vpop.permute.xlu0 %917
    %919 = vrot.lane.b32.xlu0 %v638, 124
    %v920 = vpop.permute.xlu0 %919
    %921 = vrot.lane.b32.xlu0 %v639, 124
    %v922 = vpop.permute.xlu0 %921
    %923 = vrot.lane.b32.xlu0 %v640, 124
    %v924 = vpop.permute.xlu0 %923
    %925 = vrot.lane.b32.xlu0 %v641, 124
    %v926 = vpop.permute.xlu0 %925
    %v942 = vadd.f32 %v867, %v898
    %v943 = vadd.f32 %v868, %v900
    %v944 = vadd.f32 %v869, %v902
    %v945 = vadd.f32 %v870, %v904
    %v946 = vadd.f32 %v871, %v906
    %v947 = vadd.f32 %v872, %v908
    %v948 = vadd.f32 %v873, %v910
    %v949 = vadd.f32 %v874, %v912
    %v950 = vadd.f32 %v875, %v914
    %v951 = vadd.f32 %v876, %v916
    %v952 = vadd.f32 %v877, %v918
    %v953 = vadd.f32 %v878, %v920
    %v954 = vadd.f32 %v879, %v922
    %v955 = vadd.f32 %v880, %v924
    %v956 = vadd.f32 %v881, %v926
    %v957 = vmul.f32 %v942, 0.053990968
    %v958 = vmul.f32 %v943, 0.053990968
    %v959 = vmul.f32 %v945, 0.053990968
    %v960 = vmul.f32 %v946, 0.053990968
    %v961 = vmul.f32 %v948, 0.053990968
    %v962 = vmul.f32 %v949, 0.053990968
    %v963 = vmul.f32 %v951, 0.053990968
    %v964 = vmul.f32 %v952, 0.053990968
    %v965 = vmul.f32 %v954, 0.053990968
    %v966 = vmul.f32 %v955, 0.053990968
    %v967 = vmul.f32 %v942, 0.24197072
    %v968 = vmul.f32 %v943, 0.24197072
    %v969 = vmul.f32 %v944, 0.24197072
    %v970 = vmul.f32 %v945, 0.24197072
    %v971 = vmul.f32 %v946, 0.24197072
    %v972 = vmul.f32 %v947, 0.24197072
    %v973 = vmul.f32 %v948, 0.24197072
    %v974 = vmul.f32 %v949, 0.24197072
    %v975 = vmul.f32 %v950, 0.24197072
    %v976 = vmul.f32 %v951, 0.24197072
    %v977 = vmul.f32 %v952, 0.24197072
    %v978 = vmul.f32 %v953, 0.24197072
    %v979 = vmul.f32 %v954, 0.24197072
    %v980 = vmul.f32 %v955, 0.24197072
    %v981 = vmul.f32 %v956, 0.24197072
    %vm997 = vcmask 1046528
    %v998 = vrot.slane %v967, 1
    %v999 = vrot.slane %v968, 1
    %v1000 = vsel %vm997, %v998, %v999
    %v1001 = vrot.slane %v969, 1
    %v1002 = vsel %vm997, %v999, %v1001
    %v1003 = vrot.slane %v970, 1
    %v1004 = vrot.slane %v971, 1
    %v1005 = vsel %vm997, %v1003, %v1004
    %v1006 = vrot.slane %v972, 1
    %v1007 = vsel %vm997, %v1004, %v1006
    %v1008 = vrot.slane %v973, 1
    %v1009 = vrot.slane %v974, 1
    %v1010 = vsel %vm997, %v1008, %v1009
    %v1011 = vrot.slane %v975, 1
    %v1012 = vsel %vm997, %v1009, %v1011
    %v1013 = vrot.slane %v976, 1
    %v1014 = vrot.slane %v977, 1
    %v1015 = vsel %vm997, %v1013, %v1014
    %v1016 = vrot.slane %v978, 1
    %v1017 = vsel %vm997, %v1014, %v1016
    %v1018 = vrot.slane %v979, 1
    %v1019 = vrot.slane %v980, 1
    %v1020 = vsel %vm997, %v1018, %v1019
    %v1021 = vrot.slane %v981, 1
    %v1022 = vsel %vm997, %v1019, %v1021
    %v1033 = vadd.f32 %v957, %v1000
    %v1034 = vadd.f32 %v958, %v1002
    %v1035 = vadd.f32 %v959, %v1005
    %v1036 = vadd.f32 %v960, %v1007
    %v1037 = vadd.f32 %v961, %v1010
    %v1038 = vadd.f32 %v962, %v1012
    %v1039 = vadd.f32 %v963, %v1015
    %v1040 = vadd.f32 %v964, %v1017
    %v1041 = vadd.f32 %v965, %v1020
    %v1042 = vadd.f32 %v966, %v1022
    %v1043 = vmul.f32 %v942, 0.3989423
    %v1044 = vmul.f32 %v943, 0.3989423
    %v1045 = vmul.f32 %v944, 0.3989423
    %v1046 = vmul.f32 %v945, 0.3989423
    %v1047 = vmul.f32 %v946, 0.3989423
    %v1048 = vmul.f32 %v947, 0.3989423
    %v1049 = vmul.f32 %v948, 0.3989423
    %v1050 = vmul.f32 %v949, 0.3989423
    %v1051 = vmul.f32 %v950, 0.3989423
    %v1052 = vmul.f32 %v951, 0.3989423
    %v1053 = vmul.f32 %v952, 0.3989423
    %v1054 = vmul.f32 %v953, 0.3989423
    %v1055 = vmul.f32 %v954, 0.3989423
    %v1056 = vmul.f32 %v955, 0.3989423
    %v1057 = vmul.f32 %v956, 0.3989423
    %vm1073 = vcmask 1045504
    %v1074 = vrot.slane %v1043, 2
    %v1075 = vrot.slane %v1044, 2
    %v1076 = vsel %vm1073, %v1074, %v1075
    %v1077 = vrot.slane %v1045, 2
    %v1078 = vsel %vm1073, %v1075, %v1077
    %v1079 = vrot.slane %v1046, 2
    %v1080 = vrot.slane %v1047, 2
    %v1081 = vsel %vm1073, %v1079, %v1080
    %v1082 = vrot.slane %v1048, 2
    %v1083 = vsel %vm1073, %v1080, %v1082
    %v1084 = vrot.slane %v1049, 2
    %v1085 = vrot.slane %v1050, 2
    %v1086 = vsel %vm1073, %v1084, %v1085
    %v1087 = vrot.slane %v1051, 2
    %v1088 = vsel %vm1073, %v1085, %v1087
    %v1089 = vrot.slane %v1052, 2
    %v1090 = vrot.slane %v1053, 2
    %v1091 = vsel %vm1073, %v1089, %v1090
    %v1092 = vrot.slane %v1054, 2
    %v1093 = vsel %vm1073, %v1090, %v1092
    %v1094 = vrot.slane %v1055, 2
    %v1095 = vrot.slane %v1056, 2
    %v1096 = vsel %vm1073, %v1094, %v1095
    %v1097 = vrot.slane %v1057, 2
    %v1098 = vsel %vm1073, %v1095, %v1097
    %v1109 = vadd.f32 %v1033, %v1076
    %v1110 = vadd.f32 %v1034, %v1078
    %v1111 = vadd.f32 %v1035, %v1081
    %v1112 = vadd.f32 %v1036, %v1083
    %v1113 = vadd.f32 %v1037, %v1086
    %v1114 = vadd.f32 %v1038, %v1088
    %v1115 = vadd.f32 %v1039, %v1091
    %v1116 = vadd.f32 %v1040, %v1093
    %v1117 = vadd.f32 %v1041, %v1096
    %v1118 = vadd.f32 %v1042, %v1098
    %vm1119 = vcmask 1044480
    %v1120 = vrot.slane %v967, 3
    %v1121 = vrot.slane %v968, 3
    %v1122 = vsel %vm1119, %v1120, %v1121
    %v1123 = vrot.slane %v969, 3
    %v1124 = vsel %vm1119, %v1121, %v1123
    %v1125 = vrot.slane %v970, 3
    %v1126 = vrot.slane %v971, 3
    %v1127 = vsel %vm1119, %v1125, %v1126
    %v1128 = vrot.slane %v972, 3
    %v1129 = vsel %vm1119, %v1126, %v1128
    %v1130 = vrot.slane %v973, 3
    %v1131 = vrot.slane %v974, 3
    %v1132 = vsel %vm1119, %v1130, %v1131
    %v1133 = vrot.slane %v975, 3
    %v1134 = vsel %vm1119, %v1131, %v1133
    %v1135 = vrot.slane %v976, 3
    %v1136 = vrot.slane %v977, 3
    %v1137 = vsel %vm1119, %v1135, %v1136
    %v1138 = vrot.slane %v978, 3
    %v1139 = vsel %vm1119, %v1136, %v1138
    %v1140 = vrot.slane %v979, 3
    %v1141 = vrot.slane %v980, 3
    %v1142 = vsel %vm1119, %v1140, %v1141
    %v1143 = vrot.slane %v981, 3
    %v1144 = vsel %vm1119, %v1141, %v1143
    %v1155 = vadd.f32 %v1109, %v1122
    %v1156 = vadd.f32 %v1110, %v1124
    %v1157 = vadd.f32 %v1111, %v1127
    %v1158 = vadd.f32 %v1112, %v1129
    %v1159 = vadd.f32 %v1113, %v1132
    %v1160 = vadd.f32 %v1114, %v1134
    %v1161 = vadd.f32 %v1115, %v1137
    %v1162 = vadd.f32 %v1116, %v1139
    %v1163 = vadd.f32 %v1117, %v1142
    %v1164 = vadd.f32 %v1118, %v1144
    %v1165 = vmul.f32 %v944, 0.053990968
    %v1166 = vmul.f32 %v947, 0.053990968
    %v1167 = vmul.f32 %v950, 0.053990968
    %v1168 = vmul.f32 %v953, 0.053990968
    %v1169 = vmul.f32 %v956, 0.053990968
    %vm1185 = vcmask 1043456
    %v1186 = vrot.slane %v957, 4
    %v1187 = vrot.slane %v958, 4
    %v1188 = vsel %vm1185, %v1186, %v1187
    %v1189 = vrot.slane %v1165, 4
    %v1190 = vsel %vm1185, %v1187, %v1189
    %v1191 = vrot.slane %v959, 4
    %v1192 = vrot.slane %v960, 4
    %v1193 = vsel %vm1185, %v1191, %v1192
    %v1194 = vrot.slane %v1166, 4
    %v1195 = vsel %vm1185, %v1192, %v1194
    %v1196 = vrot.slane %v961, 4
    %v1197 = vrot.slane %v962, 4
    %v1198 = vsel %vm1185, %v1196, %v1197
    %v1199 = vrot.slane %v1167, 4
    %v1200 = vsel %vm1185, %v1197, %v1199
    %v1201 = vrot.slane %v963, 4
    %v1202 = vrot.slane %v964, 4
    %v1203 = vsel %vm1185, %v1201, %v1202
    %v1204 = vrot.slane %v1168, 4
    %v1205 = vsel %vm1185, %v1202, %v1204
    %v1206 = vrot.slane %v965, 4
    %v1207 = vrot.slane %v966, 4
    %v1208 = vsel %vm1185, %v1206, %v1207
    %v1209 = vrot.slane %v1169, 4
    %v1210 = vsel %vm1185, %v1207, %v1209
    %v1221 = vadd.f32 %v1155, %v1188
    %v1222 = vadd.f32 %v1156, %v1190
    %v1223 = vadd.f32 %v1157, %v1193
    %v1224 = vadd.f32 %v1158, %v1195
    %v1225 = vadd.f32 %v1159, %v1198
    %v1226 = vadd.f32 %v1160, %v1200
    %v1227 = vadd.f32 %v1161, %v1203
    %v1228 = vadd.f32 %v1162, %v1205
    %v1229 = vadd.f32 %v1163, %v1208
    %v1230 = vadd.f32 %v1164, %v1210
    %vm1231 = vcmp.gt.f32.partialorder %v1221, 0.45
    %vm1232 = vcmp.gt.f32.partialorder %v1222, 0.45
    %vm1233 = vcmp.gt.f32.partialorder %v1223, 0.45
    %vm1234 = vcmp.gt.f32.partialorder %v1224, 0.45
    %vm1235 = vcmp.gt.f32.partialorder %v1225, 0.45
    %vm1236 = vcmp.gt.f32.partialorder %v1226, 0.45
    %vm1237 = vcmp.gt.f32.partialorder %v1227, 0.45
    %vm1238 = vcmp.gt.f32.partialorder %v1228, 0.45
    %vm1239 = vcmp.gt.f32.partialorder %v1229, 0.45
    %vm1240 = vcmp.gt.f32.partialorder %v1230, 0.45
    %v1241 = vsel %vm1231, 1.0, 0.0
    %v1242 = vsel %vm1232, 1.0, 0.0
    %v1243 = vsel %vm1233, 1.0, 0.0
    %v1244 = vsel %vm1234, 1.0, 0.0
    %v1245 = vsel %vm1235, 1.0, 0.0
    %v1246 = vsel %vm1236, 1.0, 0.0
    %v1247 = vsel %vm1237, 1.0, 0.0
    %v1248 = vsel %vm1238, 1.0, 0.0
    %v1249 = vsel %vm1239, 1.0, 0.0
    %v1250 = vsel %vm1240, 1.0, 0.0
    %vm1251 = vcmask 130048
    %1252 = vst.msk [vmem:[%s1] sm:$0xff] %vm1251, %v1241
    %1253 = vst.msk [vmem:[%s1 + $0x8] sm:$0xff] %vm1251, %v1242
    %1254 = vst.msk [vmem:[%s1 + $0x10] sm:$0xff] %vm1251, %v1243
    %1255 = vst.msk [vmem:[%s1 + $0x18] sm:$0xff] %vm1251, %v1244
    %1256 = vst.msk [vmem:[%s1 + $0x20] sm:$0xff] %vm1251, %v1245
    %1257 = vst.msk [vmem:[%s1 + $0x28] sm:$0xff] %vm1251, %v1246
    %1258 = vst.msk [vmem:[%s1 + $0x30] sm:$0xff] %vm1251, %v1247
    %1259 = vst.msk [vmem:[%s1 + $0x38] sm:$0xff] %vm1251, %v1248
    %1260 = vst.msk [vmem:[%s1 + $0x40] sm:$0xff] %vm1251, %v1249
    %1261 = vst.msk [vmem:[%s1 + $0x48] sm:$0xff] %vm1251, %v1250
    %v1262 = vsel %vm1251, %v1241, 0.0
    %v1263 = vsel %vm1251, %v1242, 0.0
    %v1264 = vadd.f32 %v1262, %v1263
    %v1265 = vsel %vm1251, %v1243, 0.0
    %v1266 = vadd.f32 %v1264, %v1265
    %v1267 = vsel %vm1251, %v1244, 0.0
    %v1268 = vadd.f32 %v1266, %v1267
    %1269 = vadd.xlane.f32.xlu0 %v1268
    %v1270 = vpop.xlane.xlu0 %1269
    %v1271 = vrot.slane %v1270, 4
    %v1272 = vadd.f32 %v1270, %v1271
    %v1273 = vrot.slane %v1272, 2
    %v1274 = vadd.f32 %v1272, %v1273
    %v1275 = vrot.slane %v1274, 1
    %v1276 = vadd.f32 %v1274, %v1275
    %s1277 = vtos %v1276
    %v1278 = vrcp.pop 512.0
    %v1279 = vmul.f32 512.0, %v1278
    %v1280 = vsub.f32 1.0, %v1279
    %v1281 = vmul.f32 %v1278, %v1280
    %v1282 = vadd.f32 %v1278, %v1281
    %vm1283 = vweird.f32 %v1278
    %v1284 = vsel %vm1283, %v1278, %v1282
    %s1285 = vtos %v1284
    %s1286 = smul.f32 %s1277, %s1285
    %s1287 = sadd.f32 %s1286, 0.0
    %v1288 = vsel %vm1251, %v1245, 0.0
    %v1289 = vsel %vm1251, %v1246, 0.0
    %v1290 = vadd.f32 %v1288, %v1289
    %v1291 = vsel %vm1251, %v1247, 0.0
    %v1292 = vadd.f32 %v1290, %v1291
    %v1293 = vsel %vm1251, %v1248, 0.0
    %v1294 = vadd.f32 %v1292, %v1293
    %v1295 = vsel %vm1251, %v1249, 0.0
    %v1296 = vadd.f32 %v1294, %v1295
    %v1297 = vsel %vm1251, %v1250, 0.0
    %v1298 = vadd.f32 %v1296, %v1297
    %1299 = vadd.xlane.f32.xlu0 %v1298
    %v1300 = vpop.xlane.xlu0 %1299
    %v1301 = vrot.slane %v1300, 4
    %v1302 = vadd.f32 %v1300, %v1301
    %v1303 = vrot.slane %v1302, 2
    %v1304 = vadd.f32 %v1302, %v1303
    %v1305 = vrot.slane %v1304, 1
    %v1306 = vadd.f32 %v1304, %v1305
    %s1307 = vtos %v1306
    %v1308 = vrcp.pop 768.0
    %v1309 = vmul.f32 768.0, %v1308
    %v1310 = vsub.f32 1.0, %v1309
    %v1311 = vmul.f32 %v1308, %v1310
    %v1312 = vadd.f32 %v1308, %v1311
    %vm1313 = vweird.f32 %v1308
    %v1314 = vsel %vm1313, %v1308, %v1312
    %s1315 = vtos %v1314
    %s1316 = smul.f32 %s1307, %s1315
    %s1317 = sadd.f32 %s1287, %s1316
    %v1318 = vrcp.pop 2.0
    %v1319 = vmul.f32 2.0, %v1318
    %v1320 = vsub.f32 1.0, %v1319
    %v1321 = vmul.f32 %v1318, %v1320
    %v1322 = vadd.f32 %v1318, %v1321
    %vm1323 = vweird.f32 %v1318
    %v1324 = vsel %vm1323, %v1318, %v1322
    %s1325 = vtos %v1324
    %s1326 = smul.f32 %s1317, %s1325
    %v1327 = vstv %s1326
    %vm1328 = vcmask 0
    %1329 = vst.msk [vmem:[#allocation2] sm:$0x1] %vm1328, %v1327
    // Predicated region
    $region6: #{hete_where2comm_fuse_forward.2} parent=1 // pred_check
      _
    $region7: #{hete_where2comm_fuse_forward.2} parent=1 // pred_check_branch
      %1331 = sbr.rel (0) target = $region9
    $region8: #{hete_where2comm_fuse_forward.2} parent=1 // pred_region
      _
    $region9: #{hete_where2comm_fuse_forward.2} parent=1 // pred_fallthru
      _
    // Predicated region
    $region10: #{hete_where2comm_fuse_forward.2} parent=1 // pred_check
      _
    $region11: #{hete_where2comm_fuse_forward.2} parent=1 // pred_check_branch
      %1333 = sbr.rel (0) target = $region13
    $region12: #{hete_where2comm_fuse_forward.2} parent=1 // pred_region
      %1335 = vsyncadd [#allocation3], 0
      %s1337 = sshll.u32 [#allocation2], 4
      %s1338 = int_to_ptr.vmem [resolvable:$true] %s1337
      %s1339 = sshll.u32 %s2, 4
      %s1340 = int_to_ptr.hbm [resolvable:$true] %s1339
      %1342 = dma.vmem_to_hbm [thread:$0]  %s1338, 16, %s1340, [#allocation3]
    $region13: #{hete_where2comm_fuse_forward.2} parent=1 // pred_fallthru
      _
    // Predicated region
    $region14: #{hete_where2comm_fuse_forward.2} parent=1 // pred_check
      _
    $region15: #{hete_where2comm_fuse_forward.2} parent=1 // pred_check_branch
      %1344 = sbr.rel (0) target = $region17
    $region16: #{hete_where2comm_fuse_forward.2} parent=1 // pred_region
      _
    $region17: #{hete_where2comm_fuse_forward.2} parent=1 // pred_fallthru
      _
    // Predicated region
    $region18: #{hete_where2comm_fuse_forward.2} parent=1 // pred_check
      _
    $region19: #{hete_where2comm_fuse_forward.2} parent=1 // pred_check_branch
      %1346 = sbr.rel (0) target = $region21
    $region20: #{hete_where2comm_fuse_forward.2} parent=1 // pred_region
      %1348 = dma.done [#allocation3], 16
    $region21: #{hete_where2comm_fuse_forward.2} parent=1 // pred_fallthru
      _
    %1349 = vsyncpa [#allocation3], 1

// kernel: hete_where2comm_fuse_forward.3
$region0: #{hete_where2comm_fuse_forward.3}
  #allocation0 [shape = 'u32[]', space=smem, size = 0x4, offset = 0x4, fixed_abs, tag = 'smem constant byte address 0x4 - core index']
  #allocation1 [shape = 'u32[72,128]{1,0:T(1,128)}', space=vmem, size = 0x9000, scoped, tag = 'internal scratch']
  #allocation2 [shape = 'f32[32,256]{1,0:T(8,128)}', space=vmem, size = 0x8000, scoped, tag = 'scratch operand']
  #allocation3 [shape = 'f32[1,256]{1,0:T(1,128)}', space=vmem, size = 0x400, scoped, tag = 'scratch operand']
  #allocation4 [shape = 'f32[1,256]{1,0:T(1,128)}', space=vmem, size = 0x400, scoped, tag = 'scratch operand']
  #allocation5 [shape = 'f32[32,256]{1,0:T(8,128)}', space=vmem, size = 0x8000, scoped, tag = 'scratch operand']
  #allocation6 [shape = 's32[1]{0}', space=sflag, size = 0x4, scoped, tag = 'scoped memory for hete_where2comm_fuse_forward.3']
  #allocation7 [shape = 'u8[512]{0}', space=smem, size = 0x200, scoped, tag = 'prefetched SMEM operand 0']
  #allocation8 [shape = 'u8[512]{0}', space=smem, size = 0x200, scoped, tag = 'prefetched SMEM operand 1']
  %s0 = inlined_call_operand.vmem [shape: s32[2], index: 0, kind: input, shape index: {}]
  %s1 = inlined_call_operand.vmem [shape: s32[2], index: 1, kind: input, shape index: {}]
  %s2 = inlined_call_operand.vmem [shape: f32[5,32,256], index: 2, kind: input, shape index: {}]
  %s3 = inlined_call_operand.vmem [shape: f32[5,1,256], index: 3, kind: input, shape index: {}]
  %s4 = inlined_call_operand.vmem [shape: f32[2,32,256], index: 4, kind: output, shape index: {}]
  %s5 = sld [smem:[#allocation0]]
  $region53: #{hete_where2comm_fuse_forward.3} parent=0
    _
  %s7 = ssub.s32 1, %s5
  %s8 = scalar_select 0, %s7, %s5
  %s10 = sshll.u32 %s0, 4
  %s11 = int_to_ptr.vmem [resolvable:$true] %s10
  %13 = dma.vmem_to_smem %s11, 16, [#allocation7], [#allocation6]
  %s15 = sshll.u32 %s1, 4
  %s16 = int_to_ptr.vmem [resolvable:$true] %s15
  %18 = dma.vmem_to_smem %s16, 16, [#allocation8], [#allocation6]
  %20 = dma.done [#allocation6], 32
  %21 = sfence
  loop: start=0, step=1, limit=8
  $region2: #{hete_where2comm_fuse_forward.3} parent=0 // loop_pre_header
    _
  $region3: #{hete_where2comm_fuse_forward.3} parent=0 // loop_header
    %s23 = sphi 0, %s27
    %p24 = scmp.ge.s32.totalorder %s23, 8
    %s30 = sphi 0, %s49
    %s31 = sphi 0, %s45
    %s32 = sphi 0, %s41
    %s33 = sphi 0, %s30
    %s34 = sphi 0, %s31
    %s35 = sphi 0, %s32
    %s36 = sphi 0, %s33
    %s37 = sphi 0, %s34
    %s38 = sphi 0, %s35
    %s66 = sphi 0, %s68
    %s69 = sphi 0, %s66
    %s70 = sphi 0, %s69
    %s86 = sphi 0, %s70
    %s106 = sphi 0, %s108
    %s109 = sphi 0, %s106
    %s110 = sphi 0, %s109
    %s126 = sphi 0, %s110
    %s134 = sphi 0, %s136
    %s137 = sphi 0, %s134
    %s138 = sphi 0, %s137
    %s154 = sphi 0, %s138
  $region4: #{hete_where2comm_fuse_forward.3} parent=0 // loop_header_branch
    %26 = sbr.rel (%p24) target = $region8
  $region5: #{hete_where2comm_fuse_forward.3} parent=0 // loop_body
    %s28 = ssub.s32 %s23, 1
    %s29 = ssub.s32 %s23, 2
    %s39 = sadd.s32 1, %s32
    %p40 = scmp.ge.s32.totalorder %s39, 3
    %s41 = scalar_select %p40, 0, %s39
    %s42 = sadd.s32 1, %s31
    %s43 = scalar_select %p40, %s42, %s31
    %p44 = scmp.ge.s32.totalorder %s43, 1
    %s45 = scalar_select %p44, 0, %s43
    %s46 = sadd.s32 1, %s30
    %s47 = scalar_select %p44, %s46, %s30
    %p48 = scmp.ge.s32.totalorder %s47, 2
    %s49 = scalar_select %p48, 0, %s47
    %s50 = sld [smem:[#allocation7 + %s30]]
    %s51 = sld [smem:[#allocation8 + %s30]]
    %s52 = ssub.s32 %s51, 1
    %p53 = scmp.lt.s32.totalorder %s32, %s52
    %s54 = scalar_select %p53, %s32, %s52
    %s55 = sadd.s32 %s50, %s54
    %s56 = sld [smem:[#allocation7 + %s49]]
    %s57 = sld [smem:[#allocation8 + %s49]]
    %s58 = ssub.s32 %s57, 1
    %p59 = scmp.lt.s32.totalorder %s41, %s58
    %s60 = scalar_select %p59, %s41, %s58
    %s61 = sadd.s32 %s56, %s60
    %s62 = ssub.s32 %s55, %s61
    %s63 = ssub.s32 %s31, %s45
    %s64 = sor.u32 %s62, %s63
    %p65 = scmp.eq.s32.totalorder %s64, 0
    %s67 = sadd.s32 %s66, 1
    %s68 = scalar_select %p65, %s66, %s67
    %p71 = pneg %p65
    %p72 = scmp.eq.s32.totalorder %s23, 5
    %p73 = por %p71, %p72
    %p74 = scmp.ne.s32.totalorder %s66, %s69
    %p75 = scmp.eq.s32.totalorder %s23, 0
    %p76 = por %p74, %p75
    %p77 = scmp.ne.s32.totalorder %s66, %s69
    %p78 = scmp.eq.s32.totalorder %s28, 5
    %p79 = por %p77, %p78
    %p80 = scmp.ne.s32.totalorder %s69, %s70
    %p81 = scmp.eq.s32.totalorder %s28, 0
    %p82 = por %p80, %p81
    %p83 = scmp.ne.s32.totalorder %s69, %s70
    %p84 = scmp.eq.s32.totalorder %s29, 5
    %p85 = por %p83, %p84
    %p87 = scmp.ne.s32.totalorder %s70, %s86
    %p88 = scmp.eq.s32.totalorder %s29, 0
    %p89 = por %p87, %p88
    %s90 = sld [smem:[#allocation7 + %s30]]
    %s91 = sld [smem:[#allocation8 + %s30]]
    %s92 = ssub.s32 %s91, 1
    %p93 = scmp.lt.s32.totalorder %s32, %s92
    %s94 = scalar_select %p93, %s32, %s92
    %s95 = sadd.s32 %s90, %s94
    %s96 = sld [smem:[#allocation7 + %s49]]
    %s97 = sld [smem:[#allocation8 + %s49]]
    %s98 = ssub.s32 %s97, 1
    %p99 = scmp.lt.s32.totalorder %s41, %s98
    %s100 = scalar_select %p99, %s41, %s98
    %s101 = sadd.s32 %s96, %s100
    %s102 = ssub.s32 %s95, %s101
    %s103 = ssub.s32 %s31, %s45
    %s104 = sor.u32 %s102, %s103
    %p105 = scmp.eq.s32.totalorder %s104, 0
    %s107 = sadd.s32 %s106, 1
    %s108 = scalar_select %p105, %s106, %s107
    %p111 = pneg %p105
    %p112 = scmp.eq.s32.totalorder %s23, 5
    %p113 = por %p111, %p112
    %p114 = scmp.ne.s32.totalorder %s106, %s109
    %p115 = scmp.eq.s32.totalorder %s23, 0
    %p116 = por %p114, %p115
    %p117 = scmp.ne.s32.totalorder %s106, %s109
    %p118 = scmp.eq.s32.totalorder %s28, 5
    %p119 = por %p117, %p118
    %p120 = scmp.ne.s32.totalorder %s109, %s110
    %p121 = scmp.eq.s32.totalorder %s28, 0
    %p122 = por %p120, %p121
    %p123 = scmp.ne.s32.totalorder %s109, %s110
    %p124 = scmp.eq.s32.totalorder %s29, 5
    %p125 = por %p123, %p124
    %p127 = scmp.ne.s32.totalorder %s110, %s126
    %p128 = scmp.eq.s32.totalorder %s29, 0
    %p129 = por %p127, %p128
    %s130 = ssub.s32 %s30, %s49
    %s131 = ssub.s32 %s31, %s45
    %s132 = sor.u32 %s130, %s131
    %p133 = scmp.eq.s32.totalorder %s132, 0
    %s135 = sadd.s32 %s134, 1
    %s136 = scalar_select %p133, %s134, %s135
    %p139 = pneg %p133
    %p140 = scmp.eq.s32.totalorder %s23, 5
    %p141 = por %p139, %p140
    %p142 = scmp.ne.s32.totalorder %s134, %s137
    %p143 = scmp.eq.s32.totalorder %s23, 0
    %p144 = por %p142, %p143
    %p145 = scmp.ne.s32.totalorder %s134, %s137
    %p146 = scmp.eq.s32.totalorder %s28, 5
    %p147 = por %p145, %p146
    %p148 = scmp.ne.s32.totalorder %s137, %s138
    %p149 = scmp.eq.s32.totalorder %s28, 0
    %p150 = por %p148, %p149
    %p151 = scmp.ne.s32.totalorder %s137, %s138
    %p152 = scmp.eq.s32.totalorder %s29, 5
    %p153 = por %p151, %p152
    %p155 = scmp.ne.s32.totalorder %s138, %s154
    %p156 = scmp.eq.s32.totalorder %s29, 0
    %p157 = por %p155, %p156
    %p158 = scmp.le.s32.totalorder 1, %s23
    %p159 = scmp.lt.s32.totalorder %s23, 7
    %p160 = pnand %p158, %p159
    %p161 = pneg %p160
    // Predicated region
    $region9: #{hete_where2comm_fuse_forward.3} parent=5 // pred_check
      _
    $region10: #{hete_where2comm_fuse_forward.3} parent=5 // pred_check_branch
      %163 = sbr.rel (%p160) target = $region12
    $region11: #{hete_where2comm_fuse_forward.3} parent=5 // pred_region
      %s164 = ssub.s32 %s23, 1
    $region12: #{hete_where2comm_fuse_forward.3} parent=5 // pred_fallthru
      _
    %p165 = scmp.lt.s32.totalorder %s23, 6
    // Predicated region
    $region13: #{hete_where2comm_fuse_forward.3} parent=5 // pred_check
      %p166 = pneg %p165
    $region14: #{hete_where2comm_fuse_forward.3} parent=5 // pred_check_branch
      %168 = sbr.rel (%p166) target = $region16
    $region15: #{hete_where2comm_fuse_forward.3} parent=5 // pred_region
      // Predicated region
      $region17: #{hete_where2comm_fuse_forward.3} parent=15 // pred_check
        %p169 = pneg %p76
      $region18: #{hete_where2comm_fuse_forward.3} parent=15 // pred_check_branch
        %171 = sbr.rel (%p169) target = $region20
      $region19: #{hete_where2comm_fuse_forward.3} parent=15 // pred_region
        %s172 = sld [smem:[#allocation7 + %s30]]
        %s173 = sld [smem:[#allocation8 + %s30]]
        %s174 = ssub.s32 %s173, 1
        %p175 = scmp.lt.s32.totalorder %s32, %s174
        %s176 = scalar_select %p175, %s32, %s174
        %s177 = sadd.s32 %s172, %s176
        %s178 = smul.u32 2, %s31
        %p179 = scmp.lt.s32.totalorder %s177, 4
        %s180 = scalar_select %p179, %s177, 4
        %p181 = scmp.lt.s32.totalorder %s178, 1
        %s182 = scalar_select %p181, %s178, 1
        %s183 = smul.addr %s180, 8
        %s184 = sadd.s32 %s182, %s183
        %s185 = smul.addr %s184, 8
        %s186 = scalar_lea.vmem %s2, %s185
        %s187 = sld [smem:[#allocation7 + %s30]]
        %s188 = sld [smem:[#allocation8 + %s30]]
        %s189 = ssub.s32 %s188, 1
        %p190 = scmp.lt.s32.totalorder %s32, %s189
        %s191 = scalar_select %p190, %s32, %s189
        %s192 = sadd.s32 %s187, %s191
        %s193 = smul.u32 2, %s31
      $region20: #{hete_where2comm_fuse_forward.3} parent=15 // pred_fallthru
        _
      // Predicated region
      $region21: #{hete_where2comm_fuse_forward.3} parent=15 // pred_check
        %p194 = pneg %p116
      $region22: #{hete_where2comm_fuse_forward.3} parent=15 // pred_check_branch
        %196 = sbr.rel (%p194) target = $region24
      $region23: #{hete_where2comm_fuse_forward.3} parent=15 // pred_region
        %s197 = sld [smem:[#allocation7 + %s30]]
        %s198 = sld [smem:[#allocation8 + %s30]]
        %s199 = ssub.s32 %s198, 1
        %p200 = scmp.lt.s32.totalorder %s32, %s199
        %s201 = scalar_select %p200, %s32, %s199
        %s202 = sadd.s32 %s197, %s201
        %s203 = smul.u32 2, %s31
        %p204 = scmp.lt.s32.totalorder %s202, 4
        %s205 = scalar_select %p204, %s202, 4
        %p206 = scmp.lt.s32.totalorder %s203, 1
        %s207 = scalar_select %p206, %s203, 1
        %s208 = smul.addr %s205, 2
        %s209 = sadd.s32 %s207, %s208
        %s210 = scalar_lea.vmem %s3, %s209
        %s211 = sld [smem:[#allocation7 + %s30]]
        %s212 = sld [smem:[#allocation8 + %s30]]
        %s213 = ssub.s32 %s212, 1
        %p214 = scmp.lt.s32.totalorder %s32, %s213
        %s215 = scalar_select %p214, %s32, %s213
        %s216 = sadd.s32 %s211, %s215
        %s217 = smul.u32 2, %s31
      $region24: #{hete_where2comm_fuse_forward.3} parent=15 // pred_fallthru
        _
    $region16: #{hete_where2comm_fuse_forward.3} parent=5 // pred_fallthru
      _
    %p218 = scmp.le.s32.totalorder 1, %s23
    %p219 = scmp.lt.s32.totalorder %s23, 7
    %p220 = pnand %p218, %p219
    %p221 = pneg %p220
    // Predicated region
    $region25: #{hete_where2comm_fuse_forward.3} parent=5 // pred_check
      _
    $region26: #{hete_where2comm_fuse_forward.3} parent=5 // pred_check_branch
      %223 = sbr.rel (%p220) target = $region28
    $region27: #{hete_where2comm_fuse_forward.3} parent=5 // pred_region
      %s224 = ssub.s32 %s23, 1
      %s225 = sld [smem:[#allocation7 + %s33]]
      %s226 = sld [smem:[#allocation8 + %s33]]
      %s227 = ssub.s32 %s226, 1
      %p228 = scmp.lt.s32.totalorder %s35, %s227
      %s229 = scalar_select %p228, %s35, %s227
      %s230 = sadd.s32 %s225, %s229
      %s231 = smul.u32 2, %s34
      %p232 = scmp.lt.s32.totalorder %s230, 4
      %s233 = scalar_select %p232, %s230, 4
      %p234 = scmp.lt.s32.totalorder %s231, 1
      %s235 = scalar_select %p234, %s231, 1
      %s236 = smul.addr %s233, 8
      %s237 = sadd.s32 %s235, %s236
      %s238 = smul.addr %s237, 8
      %s239 = scalar_lea.vmem %s2, %s238
      %p240 = pneg %p82
      %p241 = pneg %p79
      %s242 = sld [smem:[#allocation7 + %s33]]
      %s243 = sld [smem:[#allocation8 + %s33]]
      %s244 = ssub.s32 %s243, 1
      %p245 = scmp.lt.s32.totalorder %s35, %s244
      %s246 = scalar_select %p245, %s35, %s244
      %s247 = sadd.s32 %s242, %s246
      %s248 = smul.u32 2, %s34
      %p249 = scmp.lt.s32.totalorder %s247, 4
      %s250 = scalar_select %p249, %s247, 4
      %p251 = scmp.lt.s32.totalorder %s248, 1
      %s252 = scalar_select %p251, %s248, 1
      %s253 = smul.addr %s250, 2
      %s254 = sadd.s32 %s252, %s253
      %s255 = scalar_lea.vmem %s3, %s254
      %p256 = pneg %p122
      %p257 = pneg %p119
      %p258 = pneg %p150
      %p259 = pneg %p147
      %s260 = smul.u32 2, %s34
      %p261 = scmp.lt.s32.totalorder %s33, 1
      %s262 = scalar_select %p261, %s33, 1
      %p263 = scmp.lt.s32.totalorder %s260, 1
      %s264 = scalar_select %p263, %s260, 1
      %s265 = smul.addr %s262, 8
      %s266 = sadd.s32 %s264, %s265
      %s267 = smul.addr %s266, 8
      %s268 = scalar_lea.vmem %s4, %s267
      %s269 = sld [smem:[#allocation7 + %s33]]
      %s270 = sld [smem:[#allocation8 + %s33]]
      %s271 = ssub.s32 %s270, 1
      %p272 = scmp.lt.s32.totalorder %s35, %s271
      %s273 = scalar_select %p272, %s35, %s271
      %s274 = sadd.s32 %s269, %s273
      %s275 = smul.u32 2, %s34
      %p276 = scmp.lt.s32.totalorder %s274, 4
      %s277 = scalar_select %p276, %s274, 4
      %p278 = scmp.lt.s32.totalorder %s275, 1
      %s279 = scalar_select %p278, %s275, 1
      %s280 = smul.addr %s277, 8
      %s281 = sadd.s32 %s279, %s280
      %s282 = smul.addr %s281, 8
      %s283 = scalar_lea.vmem %s2, %s282
      %s284 = sld [smem:[#allocation7 + %s33]]
      %s285 = sld [smem:[#allocation8 + %s33]]
      %s286 = ssub.s32 %s285, 1
      %p287 = scmp.lt.s32.totalorder %s35, %s286
      %s288 = scalar_select %p287, %s35, %s286
      %s289 = sadd.s32 %s284, %s288
      %s290 = smul.u32 2, %s34
      %s291 = sld [smem:[#allocation7 + %s33]]
      %s292 = sld [smem:[#allocation8 + %s33]]
      %s293 = ssub.s32 %s292, 1
      %p294 = scmp.lt.s32.totalorder %s35, %s293
      %s295 = scalar_select %p294, %s35, %s293
      %s296 = sadd.s32 %s291, %s295
      %s297 = smul.u32 2, %s34
      %p298 = scmp.lt.s32.totalorder %s296, 4
      %s299 = scalar_select %p298, %s296, 4
      %p300 = scmp.lt.s32.totalorder %s297, 1
      %s301 = scalar_select %p300, %s297, 1
      %s302 = smul.addr %s299, 2
      %s303 = sadd.s32 %s301, %s302
      %s304 = scalar_lea.vmem %s3, %s303
      %s305 = sld [smem:[#allocation7 + %s33]]
      %s306 = sld [smem:[#allocation8 + %s33]]
      %s307 = ssub.s32 %s306, 1
      %p308 = scmp.lt.s32.totalorder %s35, %s307
      %s309 = scalar_select %p308, %s35, %s307
      %s310 = sadd.s32 %s305, %s309
      %s311 = smul.u32 2, %s34
      %s312 = smul.u32 2, %s34
      %p313 = scmp.lt.s32.totalorder %s33, 1
      %s314 = scalar_select %p313, %s33, 1
      %p315 = scmp.lt.s32.totalorder %s312, 1
      %s316 = scalar_select %p315, %s312, 1
      %s317 = smul.addr %s314, 8
      %s318 = sadd.s32 %s316, %s317
      %s319 = smul.addr %s318, 8
      %s320 = scalar_lea.vmem %s4, %s319
      %s321 = smul.u32 2, %s34
      %s322 = sld [smem:[#allocation8 + %s33]]
      %p323 = scmp.eq.s32.totalorder %s35, 0
      // Predicated region
      $region29: #{hete_where2comm_fuse_forward.3} parent=27 // pred_check
        %p324 = pneg %p323
      $region30: #{hete_where2comm_fuse_forward.3} parent=27 // pred_check_branch
        %326 = sbr.rel (%p324) target = $region32
      $region31: #{hete_where2comm_fuse_forward.3} parent=27 // pred_region
        %v327 = vld [vmem:[%s283] sm:$0xff]
        %v328 = vld [vmem:[%s283 + $0x8] sm:$0xff]
        %v329 = vld [vmem:[%s283 + $0x10] sm:$0xff]
        %v330 = vld [vmem:[%s283 + $0x18] sm:$0xff]
        %v331 = vld [vmem:[%s283 + $0x20] sm:$0xff]
        %v332 = vld [vmem:[%s283 + $0x28] sm:$0xff]
        %v333 = vld [vmem:[%s283 + $0x30] sm:$0xff]
        %v334 = vld [vmem:[%s283 + $0x38] sm:$0xff]
        %v335 = vmul.f32 %v327, 0.17677669
        %v336 = vmul.f32 %v328, 0.17677669
        %v337 = vmul.f32 %v329, 0.17677669
        %v338 = vmul.f32 %v330, 0.17677669
        %v339 = vmul.f32 %v331, 0.17677669
        %v340 = vmul.f32 %v332, 0.17677669
        %v341 = vmul.f32 %v333, 0.17677669
        %v342 = vmul.f32 %v334, 0.17677669
        %343 = vst [vmem:[#allocation2] sm:$0xff] %v335
        %344 = vst [vmem:[#allocation2 + $0x8] sm:$0xff] %v336
        %345 = vst [vmem:[#allocation2 + $0x10] sm:$0xff] %v337
        %346 = vst [vmem:[#allocation2 + $0x18] sm:$0xff] %v338
        %347 = vst [vmem:[#allocation2 + $0x20] sm:$0xff] %v339
        %348 = vst [vmem:[#allocation2 + $0x28] sm:$0xff] %v340
        %349 = vst [vmem:[#allocation2 + $0x30] sm:$0xff] %v341
        %350 = vst [vmem:[#allocation2 + $0x38] sm:$0xff] %v342
        %v351 = vlaneseq
        %vm352 = vcmp.ge.s32.totalorder %v351, 0
        %vm353 = vcmp.lt.s32.totalorder %v351, 256
        %vm354 = vmand %vm352, %vm353
        %355 = vst.msk [vmem:[#allocation3] sm:$0x3] %vm354, -1e+30
        %356 = vst.msk [vmem:[#allocation4] sm:$0x3] %vm354, 0.0
        %357 = vst [vmem:[#allocation5] sm:$0xff] 0.0
        %358 = vst [vmem:[#allocation5 + $0x8] sm:$0xff] 0.0
        %359 = vst [vmem:[#allocation5 + $0x10] sm:$0xff] 0.0
        %360 = vst [vmem:[#allocation5 + $0x18] sm:$0xff] 0.0
        %361 = vst [vmem:[#allocation5 + $0x20] sm:$0xff] 0.0
        %362 = vst [vmem:[#allocation5 + $0x28] sm:$0xff] 0.0
        %363 = vst [vmem:[#allocation5 + $0x30] sm:$0xff] 0.0
        %364 = vst [vmem:[#allocation5 + $0x38] sm:$0xff] 0.0
      $region32: #{hete_where2comm_fuse_forward.3} parent=27 // pred_fallthru
        _
      %p365 = scmp.lt.s32.totalorder %s35, %s322
      // Predicated region
      $region33: #{hete_where2comm_fuse_forward.3} parent=27 // pred_check
        %p366 = pneg %p365
      $region34: #{hete_where2comm_fuse_forward.3} parent=27 // pred_check_branch
        %368 = sbr.rel (%p366) target = $region36
      $region35: #{hete_where2comm_fuse_forward.3} parent=27 // pred_region
        %v369 = vld [vmem:[%s283] sm:$0xff]
        %v370 = vld [vmem:[%s283 + $0x8] sm:$0xff]
        %v371 = vld [vmem:[%s283 + $0x10] sm:$0xff]
        %v372 = vld [vmem:[%s283 + $0x18] sm:$0xff]
        %v373 = vld [vmem:[%s283 + $0x20] sm:$0xff]
        %v374 = vld [vmem:[%s283 + $0x28] sm:$0xff]
        %v375 = vld [vmem:[%s283 + $0x30] sm:$0xff]
        %v376 = vld [vmem:[%s283 + $0x38] sm:$0xff]
        %v377 = vld [vmem:[%s304] sm:$0x3]
        %v379 = vperm.slane %v377, 0
        %v380 = vperm.slane %v377, 1
        %v383 = vmul.f32 %v369, %v379
        %v384 = vmul.f32 %v370, %v380
        %v385 = vmul.f32 %v371, %v379
        %v386 = vmul.f32 %v372, %v380
        %v387 = vmul.f32 %v373, %v379
        %v388 = vmul.f32 %v374, %v380
        %v389 = vmul.f32 %v375, %v379
        %v390 = vmul.f32 %v376, %v380
        %v391 = vld [vmem:[#allocation2] sm:$0xff]
        %v392 = vld [vmem:[#allocation2 + $0x8] sm:$0xff]
        %v393 = vld [vmem:[#allocation2 + $0x10] sm:$0xff]
        %v394 = vld [vmem:[#allocation2 + $0x18] sm:$0xff]
        %v395 = vld [vmem:[#allocation2 + $0x20] sm:$0xff]
        %v396 = vld [vmem:[#allocation2 + $0x28] sm:$0xff]
        %v397 = vld [vmem:[#allocation2 + $0x30] sm:$0xff]
        %v398 = vld [vmem:[#allocation2 + $0x38] sm:$0xff]
        %v399 = vmul.f32 %v391, %v383
        %v400 = vmul.f32 %v392, %v384
        %v401 = vmul.f32 %v393, %v385
        %v402 = vmul.f32 %v394, %v386
        %v403 = vmul.f32 %v395, %v387
        %v404 = vmul.f32 %v396, %v388
        %v405 = vmul.f32 %v397, %v389
        %v406 = vmul.f32 %v398, %v390
        %v407 = vadd.f32 %v399, %v401
        %v408 = vadd.f32 %v407, %v403
        %v409 = vadd.f32 %v408, %v405
        %v410 = vrot.slane %v409, 4
        %v411 = vadd.f32 %v409, %v410
        %v412 = vrot.slane %v411, 2
        %v413 = vadd.f32 %v411, %v412
        %v414 = vrot.slane %v413, 1
        %v415 = vadd.f32 %v413, %v414
        %v416 = vadd.f32 %v400, %v402
        %v417 = vadd.f32 %v416, %v404
        %v418 = vadd.f32 %v417, %v406
        %v419 = vrot.slane %v418, 4
        %v420 = vadd.f32 %v418, %v419
        %v421 = vrot.slane %v420, 2
        %v422 = vadd.f32 %v420, %v421
        %v423 = vrot.slane %v422, 1
        %v424 = vadd.f32 %v422, %v423
        %v425 = vld [vmem:[#allocation3] sm:$0x3]
        %v428 = vrot.slane %v424, 7
        %vm429 = vcmask 1040384
        %v430 = vsel %vm429, %v415, %v428
        %v432 = vmax.f32 %v425, %v430
        %v433 = vsub.f32 %v425, %v432
        %v434 = vmul.f32 %v433, 1.442695
        %v435 = vpow.pop %v434
        %v437 = vperm.slane %v432, 0
        %v438 = vperm.slane %v432, 1
        %v441 = vsub.f32 %v415, %v437
        %v442 = vsub.f32 %v424, %v438
        %v443 = vmul.f32 %v441, 1.442695
        %v444 = vpow.pop %v443
        %v445 = vmul.f32 %v442, 1.442695
        %v446 = vpow.pop %v445
        %v447 = vld [vmem:[#allocation4] sm:$0x3]
        %v448 = vmul.f32 %v435, %v447
        %v451 = vrot.slane %v446, 7
        %v452 = vsel %vm429, %v444, %v451
        %v454 = vadd.f32 %v448, %v452
        %v455 = vlaneseq
        %vm456 = vcmp.ge.s32.totalorder %v455, 0
        %vm457 = vcmp.lt.s32.totalorder %v455, 256
        %vm458 = vmand %vm456, %vm457
        %459 = vst.msk [vmem:[#allocation4] sm:$0x3] %vm458, %v454
        %v460 = vld [vmem:[#allocation5] sm:$0xff]
        %v461 = vld [vmem:[#allocation5 + $0x8] sm:$0xff]
        %v462 = vld [vmem:[#allocation5 + $0x10] sm:$0xff]
        %v463 = vld [vmem:[#allocation5 + $0x18] sm:$0xff]
        %v464 = vld [vmem:[#allocation5 + $0x20] sm:$0xff]
        %v465 = vld [vmem:[#allocation5 + $0x28] sm:$0xff]
        %v466 = vld [vmem:[#allocation5 + $0x30] sm:$0xff]
        %v467 = vld [vmem:[#allocation5 + $0x38] sm:$0xff]
        %v469 = vperm.slane %v435, 0
        %v470 = vperm.slane %v435, 1
        %v473 = vmul.f32 %v469, %v460
        %v474 = vmul.f32 %v470, %v461
        %v475 = vmul.f32 %v469, %v462
        %v476 = vmul.f32 %v470, %v463
        %v477 = vmul.f32 %v469, %v464
        %v478 = vmul.f32 %v470, %v465
        %v479 = vmul.f32 %v469, %v466
        %v480 = vmul.f32 %v470, %v467
        %v481 = vperm.slane %v444, 0
        %v482 = vperm.slane %v446, 0
        %v483 = vmul.f32 %v481, %v383
        %v484 = vmul.f32 %v482, %v384
        %v485 = vmul.f32 %v481, %v385
        %v486 = vmul.f32 %v482, %v386
        %v487 = vmul.f32 %v481, %v387
        %v488 = vmul.f32 %v482, %v388
        %v489 = vmul.f32 %v481, %v389
        %v490 = vmul.f32 %v482, %v390
        %v491 = vadd.f32 %v473, %v483
        %v492 = vadd.f32 %v474, %v484
        %v493 = vadd.f32 %v475, %v485
        %v494 = vadd.f32 %v476, %v486
        %v495 = vadd.f32 %v477, %v487
        %v496 = vadd.f32 %v478, %v488
        %v497 = vadd.f32 %v479, %v489
        %v498 = vadd.f32 %v480, %v490
        %499 = vst [vmem:[#allocation5] sm:$0xff] %v491
        %500 = vst [vmem:[#allocation5 + $0x8] sm:$0xff] %v492
        %501 = vst [vmem:[#allocation5 + $0x10] sm:$0xff] %v493
        %502 = vst [vmem:[#allocation5 + $0x18] sm:$0xff] %v494
        %503 = vst [vmem:[#allocation5 + $0x20] sm:$0xff] %v495
        %504 = vst [vmem:[#allocation5 + $0x28] sm:$0xff] %v496
        %505 = vst [vmem:[#allocation5 + $0x30] sm:$0xff] %v497
        %506 = vst [vmem:[#allocation5 + $0x38] sm:$0xff] %v498
        %507 = vst.msk [vmem:[#allocation3] sm:$0x3] %vm458, %v432
      $region36: #{hete_where2comm_fuse_forward.3} parent=27 // pred_fallthru
        _
      %p508 = scmp.eq.s32.totalorder %s35, 2
      // Predicated region
      $region37: #{hete_where2comm_fuse_forward.3} parent=27 // pred_check
        %p509 = pneg %p508
      $region38: #{hete_where2comm_fuse_forward.3} parent=27 // pred_check_branch
        %511 = sbr.rel (%p509) target = $region40
      $region39: #{hete_where2comm_fuse_forward.3} parent=27 // pred_region
        %v512 = vld [vmem:[#allocation5] sm:$0xff]
        %v513 = vld [vmem:[#allocation5 + $0x8] sm:$0xff]
        %v514 = vld [vmem:[#allocation5 + $0x10] sm:$0xff]
        %v515 = vld [vmem:[#allocation5 + $0x18] sm:$0xff]
        %v516 = vld [vmem:[#allocation5 + $0x20] sm:$0xff]
        %v517 = vld [vmem:[#allocation5 + $0x28] sm:$0xff]
        %v518 = vld [vmem:[#allocation5 + $0x30] sm:$0xff]
        %v519 = vld [vmem:[#allocation5 + $0x38] sm:$0xff]
        %v520 = vld [vmem:[#allocation4] sm:$0x3]
        %v521 = vrcp.pop %v520
        %v522 = vmul.f32 %v520, %v521
        %v523 = vsub.f32 1.0, %v522
        %v524 = vmul.f32 %v521, %v523
        %v525 = vadd.f32 %v521, %v524
        %vm526 = vweird.f32 %v520
        %vm527 = vweird.f32 %v521
        %vm528 = vmor %vm526, %vm527
        %v529 = vsel %vm528, %v521, %v525
        %v530 = vand.u32 2147483647, %v520
        %vm531 = vcmp.eq.f32.partialorder %v530, 8.507059e+37
        %v532 = vand.u32 %v520, 2147483648
        %v533 = vor.u32 1.1754944e-38, %v532
        %v534 = vsel %vm531, %v533, %v529
        %v536 = vperm.slane %v534, 0
        %v537 = vperm.slane %v534, 1
        %v540 = vmul.f32 %v512, %v536
        %v541 = vmul.f32 %v513, %v537
        %v542 = vmul.f32 %v514, %v536
        %v543 = vmul.f32 %v515, %v537
        %v544 = vmul.f32 %v516, %v536
        %v545 = vmul.f32 %v517, %v537
        %v546 = vmul.f32 %v518, %v536
        %v547 = vmul.f32 %v519, %v537
        %548 = vst [vmem:[%s320] sm:$0xff] %v540
        %549 = vst [vmem:[%s320 + $0x8] sm:$0xff] %v541
        %550 = vst [vmem:[%s320 + $0x10] sm:$0xff] %v542
        %551 = vst [vmem:[%s320 + $0x18] sm:$0xff] %v543
        %552 = vst [vmem:[%s320 + $0x20] sm:$0xff] %v544
        %553 = vst [vmem:[%s320 + $0x28] sm:$0xff] %v545
        %554 = vst [vmem:[%s320 + $0x30] sm:$0xff] %v546
        %555 = vst [vmem:[%s320 + $0x38] sm:$0xff] %v547
      $region40: #{hete_where2comm_fuse_forward.3} parent=27 // pred_fallthru
        _
      %s556 = smul.u32 2, %s34
      %p557 = scmp.lt.s32.totalorder %s33, 1
      %s558 = scalar_select %p557, %s33, 1
      %p559 = scmp.lt.s32.totalorder %s556, 1
      %s560 = scalar_select %p559, %s556, 1
      %s561 = smul.addr %s558, 8
      %s562 = sadd.s32 %s560, %s561
      %s563 = smul.addr %s562, 8
      %s564 = scalar_lea.vmem %s4, %s563
      // Predicated region
      $region41: #{hete_where2comm_fuse_forward.3} parent=27 // pred_check
        %p565 = pneg %p147
      $region42: #{hete_where2comm_fuse_forward.3} parent=27 // pred_check_branch
        %567 = sbr.rel (%p565) target = $region44
      $region43: #{hete_where2comm_fuse_forward.3} parent=27 // pred_region
        %s568 = smul.u32 2, %s34
      $region44: #{hete_where2comm_fuse_forward.3} parent=27 // pred_fallthru
        _
    $region28: #{hete_where2comm_fuse_forward.3} parent=5 // pred_fallthru
      _
    %p569 = scmp.le.s32.totalorder 2, %s23
    // Predicated region
    $region45: #{hete_where2comm_fuse_forward.3} parent=5 // pred_check
      %p570 = pneg %p569
    $region46: #{hete_where2comm_fuse_forward.3} parent=5 // pred_check_branch
      %572 = sbr.rel (%p570) target = $region48
    $region47: #{hete_where2comm_fuse_forward.3} parent=5 // pred_region
      %s573 = ssub.s32 %s23, 2
      // Predicated region
      $region49: #{hete_where2comm_fuse_forward.3} parent=47 // pred_check
        %p574 = pneg %p153
      $region50: #{hete_where2comm_fuse_forward.3} parent=47 // pred_check_branch
        %576 = sbr.rel (%p574) target = $region52
      $region51: #{hete_where2comm_fuse_forward.3} parent=47 // pred_region
        %s577 = smul.u32 2, %s37
        %p578 = scmp.lt.s32.totalorder %s36, 1
        %s579 = scalar_select %p578, %s36, 1
        %p580 = scmp.lt.s32.totalorder %s577, 1
        %s581 = scalar_select %p580, %s577, 1
        %s582 = smul.addr %s579, 8
        %s583 = sadd.s32 %s581, %s582
        %s584 = smul.addr %s583, 8
        %s585 = scalar_lea.vmem %s4, %s584
      $region52: #{hete_where2comm_fuse_forward.3} parent=47 // pred_fallthru
        _
    $region48: #{hete_where2comm_fuse_forward.3} parent=5 // pred_fallthru
      _
  $region6: #{hete_where2comm_fuse_forward.3} parent=0 // loop_footer
    %s27 = sadd.s32 1, %s23
  $region7: #{hete_where2comm_fuse_forward.3} parent=0 // loop_footer_branch
    %22 = sbr.rel target = $region3
  $region8: #{hete_where2comm_fuse_forward.3} parent=0 // loop_exit
    _

</llo_original>
